<compile_context>
chip_gen: v7x
topology: tpu7x:2x2x1
jax: 0.10.0
libtpu: 0.0.40
codegen_flags: <defaults>
</compile_context>

<pallas_src>
import math
from math import ceil

import jax
import jax.numpy as jnp
from jax.experimental import pallas as pl
from jax.experimental.pallas import tpu as pltpu

# ----------------------------- configuration --------------------------------
D_MODEL = 32            # d_model
NODE_FEA_DIM = 10       # node_fea_dim (GAT input feature dim)
NUM_HEADS = 2           # gat_heads_per_layer = [2]
F_OUT = D_MODEL         # gat_features_per_layer = [d_model] (avg_last=True)
HF = NUM_HEADS * F_OUT  # flattened heads*features = 64
N_NODES = 12            # vocab_size (number of graph nodes)
N_EDGES = 24
BATCH = 2
SEQ = 8
MAX_TIME_SCALE_S = 5000
TIME_SCALE = 10
VT = ceil(MAX_TIME_SCALE_S / TIME_SCALE) + 1   # 501 time-interval embedding rows
LRELU_SLOPE = 0.2
EPS = 1e-16


# ----------------------------- fused Pallas kernel ---------------------------
def _head_sum(x):
    """(M, H*F) -> (M, H): per-head sum over feature lanes (XLU reduce, off-MXU)."""
    return jnp.concatenate(
        [jnp.sum(x[:, h * F_OUT:(h + 1) * F_OUT], axis=1, keepdims=True)
         for h in range(NUM_HEADS)],
        axis=1)


def node_embedding_kernel(loc_ref, tmat_ref,                       # SMEM (B,T) int32
                          nf_ref, wcat_ref, wprob_ref,             # VMEM params/inputs
                          ssrc_ref, strg_ref, sprob_ref, bias_ref,
                          eprob_ref, ohcat_ref, trg_oht_ref,
                          ttab_ref, pe_ref,
                          out_ref,                                 # (B, T, D)
                          nemb_ref):                               # VMEM scratch (N, D)
    """Fused GATLayerImp3 (concat=False, activation=None, skip+bias, trans prob)
    followed by token gather + positional + time-interval embedding."""
    f32 = jnp.float32

    # ---------------- GAT layer ----------------
    nf = nf_ref[...]                                               # (N, F_in)
    # matmul #1: coalesced linear_proj || skip_proj
    ps = jnp.dot(nf, wcat_ref[...], preferred_element_type=f32)    # (N, 2*HF)
    proj = ps[:, :HF]                                              # (N, HF)
    skip = ps[:, HF:]                                              # (N, HF)

    # per-head attention scores (VPU mul + XLU lane-sum; no MXU)
    sc_src = _head_sum(proj * ssrc_ref[...])                       # (N, H)
    sc_trg = _head_sum(proj * strg_ref[...])                       # (N, H)

    # trans-prob projection: K=1 outer product -> VPU broadcast multiply
    prob_proj = eprob_ref[...] * wprob_ref[...]                    # (E, HF)
    sc_pb = _head_sum(prob_proj * sprob_ref[...])                  # (E, H)

    # matmul #2: combined feature-lift + (src + trg) score-lift:
    #   [src_oh | trg_oh] @ [[proj, sc_src], [0, sc_trg]]
    lift_in = jnp.concatenate(
        [jnp.concatenate([proj, sc_src], axis=1),
         jnp.concatenate([jnp.zeros_like(proj), sc_trg], axis=1)],
        axis=0)                                                    # (2N, HF+H)
    lifted = jnp.dot(ohcat_ref[...], lift_in,
                     preferred_element_type=f32)                   # (E, HF+H)
    proj_lift = lifted[:, :HF]                                     # (E, HF)
    score_lift = lifted[:, HF:]                                    # (E, H)

    s = score_lift + sc_pb
    s = jnp.where(s >= 0, s, LRELU_SLOPE * s)                      # LeakyReLU(0.2)
    s = s - jnp.max(s)                                             # global max (stability)
    e = jnp.exp(s)                                                 # (E, H)

    # attention broadcast per head = lane-broadcast multiply (VPU)
    weighted = jnp.concatenate(
        [proj_lift[:, h * F_OUT:(h + 1) * F_OUT] * e[:, h:h + 1]
         for h in range(NUM_HEADS)],
        axis=1)                                                    # (E, HF)

    # matmul #3: combined neighbor aggregation + softmax denominator
    #   trg_oh^T @ [weighted | e]  (scatter-add over target node)
    aggden = jnp.dot(trg_oht_ref[...],
                     jnp.concatenate([weighted, e], axis=1),
                     preferred_element_type=f32)                   # (N, HF+H)
    agg = aggden[:, :HF]                                           # (N, HF)
    denom = aggden[:, HF:]                                         # (N, H)

    # normalize AFTER aggregation (denominator constant per target node -> identical
    # to per-edge softmax normalization), add skip, mean over heads, add bias (VPU)
    heads = [agg[:, h * F_OUT:(h + 1) * F_OUT] / (denom[:, h:h + 1] + EPS)
             + skip[:, h * F_OUT:(h + 1) * F_OUT]
             for h in range(NUM_HEADS)]
    node_emb = sum(heads) * (1.0 / NUM_HEADS) + bias_ref[...]      # (N, D)
    nemb_ref[...] = node_emb                                       # keep in VMEM scratch

    # ---------------- token gather + PE + time-interval embedding ----------------
    for b in range(BATCH):
        rows = []
        for t in range(SEQ):
            loc = loc_ref[b, t]                                    # SMEM scalar
            dt = tmat_ref[b, t]                                    # SMEM scalar
            tok = nemb_ref[pl.ds(loc, 1), :]                       # (1, D) dynamic row
            tiv = ttab_ref[pl.ds(dt, 1), :]                        # (1, D) dynamic row
            rows.append(tok + tiv + pe_ref[pl.ds(t, 1), :])
        out_ref[b] = jnp.concatenate(rows, axis=0)                 # (T, D)


# ----------------------------- wrapper ---------------------------------------
def positional_encoding(seq_len, d_model):
    pos = jnp.arange(seq_len, dtype=jnp.float32)[:, None]
    div = jnp.exp(jnp.arange(0, d_model, 2, dtype=jnp.float32)
                  * -(math.log(10000.0) / d_model))
    pe = jnp.zeros((seq_len, d_model), jnp.float32)
    pe = pe.at[:, 0::2].set(jnp.sin(pos * div))
    pe = pe.at[:, 1::2].set(jnp.cos(pos * div))
    return pe


def xavier_uniform(key, shape, fan_in, fan_out):
    bound = math.sqrt(6.0 / (fan_in + fan_out))
    return jax.random.uniform(key, shape, jnp.float32, -bound, bound)


def node_embedding_forward(params, node_features, edge_index, edge_prob,
                           loc_ids, temporal_mat):
    """NodeEmbedding.forward (add_gat + add_pe + add_time_interval), one pallas_call."""
    src_oh = jax.nn.one_hot(edge_index[0], N_NODES, dtype=jnp.float32)    # (E, N)
    trg_oh = jax.nn.one_hot(edge_index[1], N_NODES, dtype=jnp.float32)    # (E, N)
    oh_cat = jnp.concatenate([src_oh, trg_oh], axis=1)                    # (E, 2N)
    trg_oh_t = trg_oh.T                                                   # (N, E)
    w_cat = jnp.concatenate([params["wp"], params["wskip"]], axis=1)      # (F_in, 2*HF)
    pe = positional_encoding(SEQ, D_MODEL)                                # (T, D)
    # softmax over time_interval_weights ([1.0] -> weight 1.0); fold into table
    w = jax.nn.softmax(jnp.array([1.0], jnp.float32))[0]
    ttab_w = w * params["time_tab"]                                       # (VT, D)

    vmem = pl.BlockSpec(memory_space=pltpu.MemorySpace.VMEM)
    smem = pl.BlockSpec(memory_space=pltpu.MemorySpace.SMEM)

    return pl.pallas_call(
        node_embedding_kernel,
        out_shape=jax.ShapeDtypeStruct((BATCH, SEQ, D_MODEL), jnp.float32),
        in_specs=[smem, smem] + [vmem] * 12,
        out_specs=vmem,
        scratch_shapes=[pltpu.VMEM((N_NODES, F_OUT), jnp.float32)],
    )(loc_ids, temporal_mat,
      node_features, w_cat, params["wprob"],
      params["ssrc"], params["strg"], params["sprob"], params["bias"],
      edge_prob, oh_cat, trg_oh_t,
      ttab_w, pe)


# ----------------------------- pure-JAX reference -----------------------------
def reference_forward(params, node_features, edge_index, edge_prob,
                      loc_ids, temporal_mat):
    src, trg = edge_index[0], edge_index[1]
    proj = (node_features @ params["wp"]).reshape(N_NODES, NUM_HEADS, F_OUT)
    probp = (edge_prob @ params["wprob"]).reshape(N_EDGES, NUM_HEADS, F_OUT)
    ssrc = params["ssrc"].reshape(NUM_HEADS, F_OUT)
    strg = params["strg"].reshape(NUM_HEADS, F_OUT)
    sprob = params["sprob"].reshape(NUM_HEADS, F_OUT)
    sc_src = (proj * ssrc).sum(-1)
    sc_trg = (proj * strg).sum(-1)
    sc_pb = (probp * sprob).sum(-1)
    s = sc_src[src] + sc_trg[trg] + sc_pb
    s = jnp.where(s >= 0, s, LRELU_SLOPE * s)
    s = s - s.max()
    e = jnp.exp(s)
    denom = jnp.zeros((N_NODES, NUM_HEADS), jnp.float32).at[trg].add(e)
    attn = e / (denom[trg] + EPS)
    weighted = proj[src] * attn[:, :, None]
    agg = jnp.zeros((N_NODES, NUM_HEADS, F_OUT), jnp.float32).at[trg].add(weighted)
    skip = (node_features @ params["wskip"]).reshape(N_NODES, NUM_HEADS, F_OUT)
    node_emb = (agg + skip).mean(axis=1) + params["bias"][0]              # (N, D)

    tok = node_emb[loc_ids]                                               # (B, T, D)
    pe = positional_encoding(SEQ, D_MODEL)[None]                          # (1, T, D)
    tiv = params["time_tab"][temporal_mat]                                # (B, T, D)
    return tok + pe + tiv


# ----------------------------------- main -------------------------------------
if __name__ == "__main__":
    key = jax.random.PRNGKey(0)
    ks = jax.random.split(key, 12)

    params = {
        # linear_proj.weight (HF, F_in) -> stored transposed (F_in, HF)
        "wp": xavier_uniform(ks[0], (NODE_FEA_DIM, HF), NODE_FEA_DIM, HF),
        # linear_proj_tran_prob.weight (HF, 1) -> (1, HF)
        "wprob": xavier_uniform(ks[1], (1, HF), 1, HF),
        # skip_proj.weight (HF, F_in) -> (F_in, HF)
        "wskip": xavier_uniform(ks[2], (NODE_FEA_DIM, HF), NODE_FEA_DIM, HF),
        # scoring_fn_source / target / trans_prob: (1, H, F_out) flattened
        "ssrc": xavier_uniform(ks[3], (1, HF), NUM_HEADS * F_OUT, F_OUT),
        "strg": xavier_uniform(ks[4], (1, HF), NUM_HEADS * F_OUT, F_OUT),
        "sprob": xavier_uniform(ks[5], (1, HF), NUM_HEADS * F_OUT, F_OUT),
        # bias (F_out,) initialized to zeros (concat=False)
        "bias": jnp.zeros((1, F_OUT), jnp.float32),
        # time_interval_embedding[0].weight (VT, D), padding_idx=0 -> row 0 zero
        "time_tab": jax.random.normal(ks[6], (VT, D_MODEL), jnp.float32)
                        .at[0].set(0.0),
    }

    node_features = jax.random.normal(ks[7], (N_NODES, NODE_FEA_DIM), jnp.float32)
    src = jnp.arange(N_EDGES, dtype=jnp.int32) % N_NODES
    trg = (jnp.arange(N_EDGES, dtype=jnp.int32) * 3 + 1) % N_NODES
    edge_index = jnp.stack([src, trg], axis=0)                            # (2, E)
    edge_prob = jax.random.uniform(ks[8], (N_EDGES, 1), jnp.float32)      # (E, 1)
    loc_ids = jax.random.randint(ks[9], (BATCH, SEQ), 0, N_NODES, jnp.int32)
    temporal_mat = jax.random.randint(ks[10], (BATCH, SEQ), 0, VT, jnp.int32)

    forward = jax.jit(node_embedding_forward)
    out = forward(params, node_features, edge_index, edge_prob,
                  loc_ids, temporal_mat)
    out = jax.block_until_ready(out)

    ref = reference_forward(params, node_features, edge_index, edge_prob,
                            loc_ids, temporal_mat)
    assert out.shape == (BATCH, SEQ, D_MODEL)
    assert jnp.allclose(out, ref, rtol=1e-2, atol=1e-2), "mismatch vs reference"

    print("KERNEL_OK")
</pallas_src>

<mosaic_0001>
module attributes {stable_mosaic.version = 11 : i64} {
  func.func @node_embedding_kernel(%arg0: memref<2x8xi32, #tpu.memory_space<smem>>, %arg1: memref<2x8xi32, #tpu.memory_space<smem>>, %arg2: memref<12x10xf32, #tpu.memory_space<vmem>>, %arg3: memref<10x128xf32, #tpu.memory_space<vmem>>, %arg4: memref<1x64xf32, #tpu.memory_space<vmem>>, %arg5: memref<1x64xf32, #tpu.memory_space<vmem>>, %arg6: memref<1x64xf32, #tpu.memory_space<vmem>>, %arg7: memref<1x64xf32, #tpu.memory_space<vmem>>, %arg8: memref<1x32xf32, #tpu.memory_space<vmem>>, %arg9: memref<24x1xf32, #tpu.memory_space<vmem>>, %arg10: memref<24x24xf32, #tpu.memory_space<vmem>>, %arg11: memref<12x24xf32, #tpu.memory_space<vmem>>, %arg12: memref<501x32xf32, #tpu.memory_space<vmem>>, %arg13: memref<8x32xf32, #tpu.memory_space<vmem>>, %arg14: memref<2x8x32xf32, #tpu.memory_space<vmem>>, %arg15: memref<12x32xf32, #tpu.memory_space<vmem>>) attributes {dimension_semantics = [], scalar_prefetch = 0 : i64, scratch_operands = 1 : i64, tpu.core_type = #tpu.core_type<tc>} {
    %c0 = arith.constant 0 : index
    %c0_0 = arith.constant 0 : index
    %0 = vector.load %arg2[%c0, %c0_0] : memref<12x10xf32, #tpu.memory_space<vmem>>, vector<12x10xf32>
    %c0_1 = arith.constant 0 : index
    %c0_2 = arith.constant 0 : index
    %1 = vector.load %arg3[%c0_1, %c0_2] : memref<10x128xf32, #tpu.memory_space<vmem>>, vector<10x128xf32>
    %cst = arith.constant dense<0.000000e+00> : vector<12x128xf32>
    %2 = tpu.matmul %0, %1, %cst {dimension_numbers = #tpu.dot_dimension_numbers<[1], [0], [0], [1], [0, 0, 1, 1], [], []>} : vector<12x10xf32>, vector<10x128xf32>, vector<12x128xf32> -> vector<12x128xf32>
    %3 = vector.extract_strided_slice %2 {offsets = [0, 0], sizes = [12, 64], strides = [1, 1]} : vector<12x128xf32> to vector<12x64xf32>
    %4 = vector.extract_strided_slice %2 {offsets = [0, 64], sizes = [12, 64], strides = [1, 1]} : vector<12x128xf32> to vector<12x64xf32>
    %c0_3 = arith.constant 0 : index
    %c0_4 = arith.constant 0 : index
    %5 = vector.load %arg5[%c0_3, %c0_4] : memref<1x64xf32, #tpu.memory_space<vmem>>, vector<1x64xf32>
    %6 = vector.broadcast %5 : vector<1x64xf32> to vector<12x64xf32>
    %7 = arith.mulf %3, %6 : vector<12x64xf32>
    %8 = vector.extract_strided_slice %7 {offsets = [0, 0], sizes = [12, 32], strides = [1, 1]} : vector<12x64xf32> to vector<12x32xf32>
    %cst_5 = arith.constant dense<0.000000e+00> : vector<12xf32>
    %9 = vector.multi_reduction <add>, %8, %cst_5 [1] : vector<12x32xf32> to vector<12xf32>
    %10 = vector.shape_cast %9 : vector<12xf32> to vector<12x1xf32>
    %11 = vector.extract_strided_slice %7 {offsets = [0, 32], sizes = [12, 32], strides = [1, 1]} : vector<12x64xf32> to vector<12x32xf32>
    %cst_6 = arith.constant dense<0.000000e+00> : vector<12xf32>
    %12 = vector.multi_reduction <add>, %11, %cst_6 [1] : vector<12x32xf32> to vector<12xf32>
    %13 = vector.shape_cast %12 : vector<12xf32> to vector<12x1xf32>
    %14 = tpu.concatenate %10, %13 in 1 : vector<12x1xf32>, vector<12x1xf32> -> vector<12x2xf32>
    %c0_7 = arith.constant 0 : index
    %c0_8 = arith.constant 0 : index
    %15 = vector.load %arg6[%c0_7, %c0_8] : memref<1x64xf32, #tpu.memory_space<vmem>>, vector<1x64xf32>
    %16 = vector.broadcast %15 : vector<1x64xf32> to vector<12x64xf32>
    %17 = arith.mulf %3, %16 : vector<12x64xf32>
    %18 = vector.extract_strided_slice %17 {offsets = [0, 0], sizes = [12, 32], strides = [1, 1]} : vector<12x64xf32> to vector<12x32xf32>
    %cst_9 = arith.constant dense<0.000000e+00> : vector<12xf32>
    %19 = vector.multi_reduction <add>, %18, %cst_9 [1] : vector<12x32xf32> to vector<12xf32>
    %20 = vector.shape_cast %19 : vector<12xf32> to vector<12x1xf32>
    %21 = vector.extract_strided_slice %17 {offsets = [0, 32], sizes = [12, 32], strides = [1, 1]} : vector<12x64xf32> to vector<12x32xf32>
    %cst_10 = arith.constant dense<0.000000e+00> : vector<12xf32>
    %22 = vector.multi_reduction <add>, %21, %cst_10 [1] : vector<12x32xf32> to vector<12xf32>
    %23 = vector.shape_cast %22 : vector<12xf32> to vector<12x1xf32>
    %24 = tpu.concatenate %20, %23 in 1 : vector<12x1xf32>, vector<12x1xf32> -> vector<12x2xf32>
    %c0_11 = arith.constant 0 : index
    %c0_12 = arith.constant 0 : index
    %25 = vector.load %arg9[%c0_11, %c0_12] : memref<24x1xf32, #tpu.memory_space<vmem>>, vector<24x1xf32>
    %c0_13 = arith.constant 0 : index
    %c0_14 = arith.constant 0 : index
    %26 = vector.load %arg4[%c0_13, %c0_14] : memref<1x64xf32, #tpu.memory_space<vmem>>, vector<1x64xf32>
    %27 = vector.broadcast %25 : vector<24x1xf32> to vector<24x64xf32>
    %28 = vector.broadcast %26 : vector<1x64xf32> to vector<24x64xf32>
    %29 = arith.mulf %27, %28 : vector<24x64xf32>
    %c0_15 = arith.constant 0 : index
    %c0_16 = arith.constant 0 : index
    %30 = vector.load %arg7[%c0_15, %c0_16] : memref<1x64xf32, #tpu.memory_space<vmem>>, vector<1x64xf32>
    %31 = vector.broadcast %30 : vector<1x64xf32> to vector<24x64xf32>
    %32 = arith.mulf %29, %31 : vector<24x64xf32>
    %33 = vector.extract_strided_slice %32 {offsets = [0, 0], sizes = [24, 32], strides = [1, 1]} : vector<24x64xf32> to vector<24x32xf32>
    %cst_17 = arith.constant dense<0.000000e+00> : vector<24xf32>
    %34 = vector.multi_reduction <add>, %33, %cst_17 [1] : vector<24x32xf32> to vector<24xf32>
    %35 = vector.shape_cast %34 : vector<24xf32> to vector<24x1xf32>
    %36 = vector.extract_strided_slice %32 {offsets = [0, 32], sizes = [24, 32], strides = [1, 1]} : vector<24x64xf32> to vector<24x32xf32>
    %cst_18 = arith.constant dense<0.000000e+00> : vector<24xf32>
    %37 = vector.multi_reduction <add>, %36, %cst_18 [1] : vector<24x32xf32> to vector<24xf32>
    %38 = vector.shape_cast %37 : vector<24xf32> to vector<24x1xf32>
    %39 = tpu.concatenate %35, %38 in 1 : vector<24x1xf32>, vector<24x1xf32> -> vector<24x2xf32>
    %40 = tpu.concatenate %3, %14 in 1 : vector<12x64xf32>, vector<12x2xf32> -> vector<12x66xf32>
    %cst_19 = arith.constant 0.000000e+00 : f32
    %41 = vector.broadcast %cst_19 : f32 to vector<12x64xf32>
    %42 = tpu.concatenate %41, %24 in 1 : vector<12x64xf32>, vector<12x2xf32> -> vector<12x66xf32>
    %43 = tpu.concatenate %40, %42 in 0 : vector<12x66xf32>, vector<12x66xf32> -> vector<24x66xf32>
    %c0_20 = arith.constant 0 : index
    %c0_21 = arith.constant 0 : index
    %44 = vector.load %arg10[%c0_20, %c0_21] : memref<24x24xf32, #tpu.memory_space<vmem>>, vector<24x24xf32>
    %cst_22 = arith.constant dense<0.000000e+00> : vector<24x66xf32>
    %45 = tpu.matmul %44, %43, %cst_22 {dimension_numbers = #tpu.dot_dimension_numbers<[1], [0], [0], [1], [0, 0, 1, 1], [], []>} : vector<24x24xf32>, vector<24x66xf32>, vector<24x66xf32> -> vector<24x66xf32>
    %46 = vector.extract_strided_slice %45 {offsets = [0, 0], sizes = [24, 64], strides = [1, 1]} : vector<24x66xf32> to vector<24x64xf32>
    %47 = vector.extract_strided_slice %45 {offsets = [0, 64], sizes = [24, 2], strides = [1, 1]} : vector<24x66xf32> to vector<24x2xf32>
    %48 = arith.addf %47, %39 : vector<24x2xf32>
    %cst_23 = arith.constant 0.000000e+00 : f32
    %49 = vector.broadcast %cst_23 : f32 to vector<24x2xf32>
    %50 = arith.cmpf oge, %48, %49 : vector<24x2xf32>
    %cst_24 = arith.constant 2.000000e-01 : f32
    %51 = vector.broadcast %cst_24 : f32 to vector<24x2xf32>
    %52 = arith.mulf %51, %48 : vector<24x2xf32>
    %53 = arith.select %50, %48, %52 : vector<24x2xi1>, vector<24x2xf32>
    %54 = vector.shape_cast %53 : vector<24x2xf32> to vector<1x24x2xf32>
    %cst_25 = arith.constant dense<0xFF800000> : vector<1xf32>
    %55 = vector.multi_reduction <maximumf>, %54, %cst_25 [1, 2] : vector<1x24x2xf32> to vector<1xf32>
    %56 = vector.shape_cast %55 : vector<1xf32> to vector<1x1x1xf32>
    %57 = vector.extract %56[0, 0, 0] : f32 from vector<1x1x1xf32>
    %58 = vector.broadcast %57 : f32 to vector<24x2xf32>
    %59 = arith.subf %53, %58 : vector<24x2xf32>
    %60 = math.exp %59 : vector<24x2xf32>
    %61 = vector.extract_strided_slice %46 {offsets = [0, 0], sizes = [24, 32], strides = [1, 1]} : vector<24x64xf32> to vector<24x32xf32>
    %62 = vector.extract_strided_slice %60 {offsets = [0, 0], sizes = [24, 1], strides = [1, 1]} : vector<24x2xf32> to vector<24x1xf32>
    %63 = vector.broadcast %62 : vector<24x1xf32> to vector<24x32xf32>
    %64 = arith.mulf %61, %63 : vector<24x32xf32>
    %65 = vector.extract_strided_slice %46 {offsets = [0, 32], sizes = [24, 32], strides = [1, 1]} : vector<24x64xf32> to vector<24x32xf32>
    %66 = vector.extract_strided_slice %60 {offsets = [0, 1], sizes = [24, 1], strides = [1, 1]} : vector<24x2xf32> to vector<24x1xf32>
    %67 = vector.broadcast %66 : vector<24x1xf32> to vector<24x32xf32>
    %68 = arith.mulf %65, %67 : vector<24x32xf32>
    %69 = tpu.concatenate %64, %68 in 1 : vector<24x32xf32>, vector<24x32xf32> -> vector<24x64xf32>
    %c0_26 = arith.constant 0 : index
    %c0_27 = arith.constant 0 : index
    %70 = vector.load %arg11[%c0_26, %c0_27] : memref<12x24xf32, #tpu.memory_space<vmem>>, vector<12x24xf32>
    %71 = tpu.concatenate %69, %60 in 1 : vector<24x64xf32>, vector<24x2xf32> -> vector<24x66xf32>
    %cst_28 = arith.constant dense<0.000000e+00> : vector<12x66xf32>
    %72 = tpu.matmul %70, %71, %cst_28 {dimension_numbers = #tpu.dot_dimension_numbers<[1], [0], [0], [1], [0, 0, 1, 1], [], []>} : vector<12x24xf32>, vector<24x66xf32>, vector<12x66xf32> -> vector<12x66xf32>
    %73 = vector.extract_strided_slice %72 {offsets = [0, 0], sizes = [12, 64], strides = [1, 1]} : vector<12x66xf32> to vector<12x64xf32>
    %74 = vector.extract_strided_slice %72 {offsets = [0, 64], sizes = [12, 2], strides = [1, 1]} : vector<12x66xf32> to vector<12x2xf32>
    %75 = vector.extract_strided_slice %73 {offsets = [0, 0], sizes = [12, 32], strides = [1, 1]} : vector<12x64xf32> to vector<12x32xf32>
    %76 = vector.extract_strided_slice %74 {offsets = [0, 0], sizes = [12, 1], strides = [1, 1]} : vector<12x2xf32> to vector<12x1xf32>
    %cst_29 = arith.constant 1.000000e-16 : f32
    %77 = vector.broadcast %cst_29 : f32 to vector<12x1xf32>
    %78 = arith.addf %76, %77 : vector<12x1xf32>
    %79 = vector.broadcast %78 : vector<12x1xf32> to vector<12x32xf32>
    %80 = arith.divf %75, %79 : vector<12x32xf32>
    %81 = vector.extract_strided_slice %4 {offsets = [0, 0], sizes = [12, 32], strides = [1, 1]} : vector<12x64xf32> to vector<12x32xf32>
    %82 = arith.addf %80, %81 : vector<12x32xf32>
    %83 = vector.extract_strided_slice %73 {offsets = [0, 32], sizes = [12, 32], strides = [1, 1]} : vector<12x64xf32> to vector<12x32xf32>
    %84 = vector.extract_strided_slice %74 {offsets = [0, 1], sizes = [12, 1], strides = [1, 1]} : vector<12x2xf32> to vector<12x1xf32>
    %cst_30 = arith.constant 1.000000e-16 : f32
    %85 = vector.broadcast %cst_30 : f32 to vector<12x1xf32>
    %86 = arith.addf %84, %85 : vector<12x1xf32>
    %87 = vector.broadcast %86 : vector<12x1xf32> to vector<12x32xf32>
    %88 = arith.divf %83, %87 : vector<12x32xf32>
    %89 = vector.extract_strided_slice %4 {offsets = [0, 32], sizes = [12, 32], strides = [1, 1]} : vector<12x64xf32> to vector<12x32xf32>
    %90 = arith.addf %88, %89 : vector<12x32xf32>
    %cst_31 = arith.constant 0.000000e+00 : f32
    %91 = vector.broadcast %cst_31 : f32 to vector<12x32xf32>
    %92 = arith.addf %91, %82 : vector<12x32xf32>
    %93 = arith.addf %92, %90 : vector<12x32xf32>
    %cst_32 = arith.constant 5.000000e-01 : f32
    %94 = vector.broadcast %cst_32 : f32 to vector<12x32xf32>
    %95 = arith.mulf %93, %94 : vector<12x32xf32>
    %c0_33 = arith.constant 0 : index
    %c0_34 = arith.constant 0 : index
    %96 = vector.load %arg8[%c0_33, %c0_34] : memref<1x32xf32, #tpu.memory_space<vmem>>, vector<1x32xf32>
    %97 = vector.broadcast %96 : vector<1x32xf32> to vector<12x32xf32>
    %98 = arith.addf %95, %97 : vector<12x32xf32>
    %c0_35 = arith.constant 0 : index
    %c0_36 = arith.constant 0 : index
    %99 = vector.load %arg15[%c0_35, %c0_36] : memref<12x32xf32, #tpu.memory_space<vmem>>, vector<12x32xf32>
    tpu.vector_store %arg15[%c0_35, %c0_36], %98 {strides = array<i32>} : memref<12x32xf32, #tpu.memory_space<vmem>>, vector<12x32xf32>,
    %c0_37 = arith.constant 0 : index
    %c0_38 = arith.constant 0 : index
    %100 = memref.load %arg0[%c0_37, %c0_38] : memref<2x8xi32, #tpu.memory_space<smem>>
    %c0_39 = arith.constant 0 : index
    %c0_40 = arith.constant 0 : index
    %101 = memref.load %arg1[%c0_39, %c0_40] : memref<2x8xi32, #tpu.memory_space<smem>>
    %102 = arith.index_cast %100 : i32 to index
    %c0_41 = arith.constant 0 : index
    %103 = vector.load %arg15[%102, %c0_41] : memref<12x32xf32, #tpu.memory_space<vmem>>, vector<1x32xf32>
    %104 = arith.index_cast %101 : i32 to index
    %c0_42 = arith.constant 0 : index
    %105 = vector.load %arg12[%104, %c0_42] : memref<501x32xf32, #tpu.memory_space<vmem>>, vector<1x32xf32>
    %106 = arith.addf %103, %105 : vector<1x32xf32>
    %c0_43 = arith.constant 0 : index
    %c0_44 = arith.constant 0 : index
    %107 = vector.load %arg13[%c0_43, %c0_44] : memref<8x32xf32, #tpu.memory_space<vmem>>, vector<1x32xf32>
    %108 = arith.addf %106, %107 : vector<1x32xf32>
    %c0_45 = arith.constant 0 : index
    %c1 = arith.constant 1 : index
    %109 = memref.load %arg0[%c0_45, %c1] : memref<2x8xi32, #tpu.memory_space<smem>>
    %c0_46 = arith.constant 0 : index
    %c1_47 = arith.constant 1 : index
    %110 = memref.load %arg1[%c0_46, %c1_47] : memref<2x8xi32, #tpu.memory_space<smem>>
    %111 = arith.index_cast %109 : i32 to index
    %c0_48 = arith.constant 0 : index
    %112 = vector.load %arg15[%111, %c0_48] : memref<12x32xf32, #tpu.memory_space<vmem>>, vector<1x32xf32>
    %113 = arith.index_cast %110 : i32 to index
    %c0_49 = arith.constant 0 : index
    %114 = vector.load %arg12[%113, %c0_49] : memref<501x32xf32, #tpu.memory_space<vmem>>, vector<1x32xf32>
    %115 = arith.addf %112, %114 : vector<1x32xf32>
    %c1_50 = arith.constant 1 : index
    %c0_51 = arith.constant 0 : index
    %116 = vector.load %arg13[%c1_50, %c0_51] : memref<8x32xf32, #tpu.memory_space<vmem>>, vector<1x32xf32>
    %117 = arith.addf %115, %116 : vector<1x32xf32>
    %c0_52 = arith.constant 0 : index
    %c2 = arith.constant 2 : index
    %118 = memref.load %arg0[%c0_52, %c2] : memref<2x8xi32, #tpu.memory_space<smem>>
    %c0_53 = arith.constant 0 : index
    %c2_54 = arith.constant 2 : index
    %119 = memref.load %arg1[%c0_53, %c2_54] : memref<2x8xi32, #tpu.memory_space<smem>>
    %120 = arith.index_cast %118 : i32 to index
    %c0_55 = arith.constant 0 : index
    %121 = vector.load %arg15[%120, %c0_55] : memref<12x32xf32, #tpu.memory_space<vmem>>, vector<1x32xf32>
    %122 = arith.index_cast %119 : i32 to index
    %c0_56 = arith.constant 0 : index
    %123 = vector.load %arg12[%122, %c0_56] : memref<501x32xf32, #tpu.memory_space<vmem>>, vector<1x32xf32>
    %124 = arith.addf %121, %123 : vector<1x32xf32>
    %c2_57 = arith.constant 2 : index
    %c0_58 = arith.constant 0 : index
    %125 = vector.load %arg13[%c2_57, %c0_58] : memref<8x32xf32, #tpu.memory_space<vmem>>, vector<1x32xf32>
    %126 = arith.addf %124, %125 : vector<1x32xf32>
    %c0_59 = arith.constant 0 : index
    %c3 = arith.constant 3 : index
    %127 = memref.load %arg0[%c0_59, %c3] : memref<2x8xi32, #tpu.memory_space<smem>>
    %c0_60 = arith.constant 0 : index
    %c3_61 = arith.constant 3 : index
    %128 = memref.load %arg1[%c0_60, %c3_61] : memref<2x8xi32, #tpu.memory_space<smem>>
    %129 = arith.index_cast %127 : i32 to index
    %c0_62 = arith.constant 0 : index
    %130 = vector.load %arg15[%129, %c0_62] : memref<12x32xf32, #tpu.memory_space<vmem>>, vector<1x32xf32>
    %131 = arith.index_cast %128 : i32 to index
    %c0_63 = arith.constant 0 : index
    %132 = vector.load %arg12[%131, %c0_63] : memref<501x32xf32, #tpu.memory_space<vmem>>, vector<1x32xf32>
    %133 = arith.addf %130, %132 : vector<1x32xf32>
    %c3_64 = arith.constant 3 : index
    %c0_65 = arith.constant 0 : index
    %134 = vector.load %arg13[%c3_64, %c0_65] : memref<8x32xf32, #tpu.memory_space<vmem>>, vector<1x32xf32>
    %135 = arith.addf %133, %134 : vector<1x32xf32>
    %c0_66 = arith.constant 0 : index
    %c4 = arith.constant 4 : index
    %136 = memref.load %arg0[%c0_66, %c4] : memref<2x8xi32, #tpu.memory_space<smem>>
    %c0_67 = arith.constant 0 : index
    %c4_68 = arith.constant 4 : index
    %137 = memref.load %arg1[%c0_67, %c4_68] : memref<2x8xi32, #tpu.memory_space<smem>>
    %138 = arith.index_cast %136 : i32 to index
    %c0_69 = arith.constant 0 : index
    %139 = vector.load %arg15[%138, %c0_69] : memref<12x32xf32, #tpu.memory_space<vmem>>, vector<1x32xf32>
    %140 = arith.index_cast %137 : i32 to index
    %c0_70 = arith.constant 0 : index
    %141 = vector.load %arg12[%140, %c0_70] : memref<501x32xf32, #tpu.memory_space<vmem>>, vector<1x32xf32>
    %142 = arith.addf %139, %141 : vector<1x32xf32>
    %c4_71 = arith.constant 4 : index
    %c0_72 = arith.constant 0 : index
    %143 = vector.load %arg13[%c4_71, %c0_72] : memref<8x32xf32, #tpu.memory_space<vmem>>, vector<1x32xf32>
    %144 = arith.addf %142, %143 : vector<1x32xf32>
    %c0_73 = arith.constant 0 : index
    %c5 = arith.constant 5 : index
    %145 = memref.load %arg0[%c0_73, %c5] : memref<2x8xi32, #tpu.memory_space<smem>>
    %c0_74 = arith.constant 0 : index
    %c5_75 = arith.constant 5 : index
    %146 = memref.load %arg1[%c0_74, %c5_75] : memref<2x8xi32, #tpu.memory_space<smem>>
    %147 = arith.index_cast %145 : i32 to index
    %c0_76 = arith.constant 0 : index
    %148 = vector.load %arg15[%147, %c0_76] : memref<12x32xf32, #tpu.memory_space<vmem>>, vector<1x32xf32>
    %149 = arith.index_cast %146 : i32 to index
    %c0_77 = arith.constant 0 : index
    %150 = vector.load %arg12[%149, %c0_77] : memref<501x32xf32, #tpu.memory_space<vmem>>, vector<1x32xf32>
    %151 = arith.addf %148, %150 : vector<1x32xf32>
    %c5_78 = arith.constant 5 : index
    %c0_79 = arith.constant 0 : index
    %152 = vector.load %arg13[%c5_78, %c0_79] : memref<8x32xf32, #tpu.memory_space<vmem>>, vector<1x32xf32>
    %153 = arith.addf %151, %152 : vector<1x32xf32>
    %c0_80 = arith.constant 0 : index
    %c6 = arith.constant 6 : index
    %154 = memref.load %arg0[%c0_80, %c6] : memref<2x8xi32, #tpu.memory_space<smem>>
    %c0_81 = arith.constant 0 : index
    %c6_82 = arith.constant 6 : index
    %155 = memref.load %arg1[%c0_81, %c6_82] : memref<2x8xi32, #tpu.memory_space<smem>>
    %156 = arith.index_cast %154 : i32 to index
    %c0_83 = arith.constant 0 : index
    %157 = vector.load %arg15[%156, %c0_83] : memref<12x32xf32, #tpu.memory_space<vmem>>, vector<1x32xf32>
    %158 = arith.index_cast %155 : i32 to index
    %c0_84 = arith.constant 0 : index
    %159 = vector.load %arg12[%158, %c0_84] : memref<501x32xf32, #tpu.memory_space<vmem>>, vector<1x32xf32>
    %160 = arith.addf %157, %159 : vector<1x32xf32>
    %c6_85 = arith.constant 6 : index
    %c0_86 = arith.constant 0 : index
    %161 = vector.load %arg13[%c6_85, %c0_86] : memref<8x32xf32, #tpu.memory_space<vmem>>, vector<1x32xf32>
    %162 = arith.addf %160, %161 : vector<1x32xf32>
    %c0_87 = arith.constant 0 : index
    %c7 = arith.constant 7 : index
    %163 = memref.load %arg0[%c0_87, %c7] : memref<2x8xi32, #tpu.memory_space<smem>>
    %c0_88 = arith.constant 0 : index
    %c7_89 = arith.constant 7 : index
    %164 = memref.load %arg1[%c0_88, %c7_89] : memref<2x8xi32, #tpu.memory_space<smem>>
    %165 = arith.index_cast %163 : i32 to index
    %c0_90 = arith.constant 0 : index
    %166 = vector.load %arg15[%165, %c0_90] : memref<12x32xf32, #tpu.memory_space<vmem>>, vector<1x32xf32>
    %167 = arith.index_cast %164 : i32 to index
    %c0_91 = arith.constant 0 : index
    %168 = vector.load %arg12[%167, %c0_91] : memref<501x32xf32, #tpu.memory_space<vmem>>, vector<1x32xf32>
    %169 = arith.addf %166, %168 : vector<1x32xf32>
    %c7_92 = arith.constant 7 : index
    %c0_93 = arith.constant 0 : index
    %170 = vector.load %arg13[%c7_92, %c0_93] : memref<8x32xf32, #tpu.memory_space<vmem>>, vector<1x32xf32>
    %171 = arith.addf %169, %170 : vector<1x32xf32>
    %172 = tpu.concatenate %108, %117, %126, %135, %144, %153, %162, %171 in 0 : vector<1x32xf32>, vector<1x32xf32>, vector<1x32xf32>, vector<1x32xf32>, vector<1x32xf32>, vector<1x32xf32>, vector<1x32xf32>, vector<1x32xf32> -> vector<8x32xf32>
    %c0_94 = arith.constant 0 : index
    %c0_95 = arith.constant 0 : index
    %c0_96 = arith.constant 0 : index
    %173 = vector.load %arg14[%c0_94, %c0_95, %c0_96] : memref<2x8x32xf32, #tpu.memory_space<vmem>>, vector<1x8x32xf32>
    %174 = vector.shape_cast %173 : vector<1x8x32xf32> to vector<8x32xf32>
    %175 = vector.shape_cast %172 : vector<8x32xf32> to vector<1x8x32xf32>
    tpu.vector_store %arg14[%c0_94, %c0_95, %c0_96], %175 {strides = array<i32>} : memref<2x8x32xf32, #tpu.memory_space<vmem>>, vector<1x8x32xf32>,
    %c1_97 = arith.constant 1 : index
    %c0_98 = arith.constant 0 : index
    %176 = memref.load %arg0[%c1_97, %c0_98] : memref<2x8xi32, #tpu.memory_space<smem>>
    %c1_99 = arith.constant 1 : index
    %c0_100 = arith.constant 0 : index
    %177 = memref.load %arg1[%c1_99, %c0_100] : memref<2x8xi32, #tpu.memory_space<smem>>
    %178 = arith.index_cast %176 : i32 to index
    %c0_101 = arith.constant 0 : index
    %179 = vector.load %arg15[%178, %c0_101] : memref<12x32xf32, #tpu.memory_space<vmem>>, vector<1x32xf32>
    %180 = arith.index_cast %177 : i32 to index
    %c0_102 = arith.constant 0 : index
    %181 = vector.load %arg12[%180, %c0_102] : memref<501x32xf32, #tpu.memory_space<vmem>>, vector<1x32xf32>
    %182 = arith.addf %179, %181 : vector<1x32xf32>
    %c0_103 = arith.constant 0 : index
    %c0_104 = arith.constant 0 : index
    %183 = vector.load %arg13[%c0_103, %c0_104] : memref<8x32xf32, #tpu.memory_space<vmem>>, vector<1x32xf32>
    %184 = arith.addf %182, %183 : vector<1x32xf32>
    %c1_105 = arith.constant 1 : index
    %c1_106 = arith.constant 1 : index
    %185 = memref.load %arg0[%c1_105, %c1_106] : memref<2x8xi32, #tpu.memory_space<smem>>
    %c1_107 = arith.constant 1 : index
    %c1_108 = arith.constant 1 : index
    %186 = memref.load %arg1[%c1_107, %c1_108] : memref<2x8xi32, #tpu.memory_space<smem>>
    %187 = arith.index_cast %185 : i32 to index
    %c0_109 = arith.constant 0 : index
    %188 = vector.load %arg15[%187, %c0_109] : memref<12x32xf32, #tpu.memory_space<vmem>>, vector<1x32xf32>
    %189 = arith.index_cast %186 : i32 to index
    %c0_110 = arith.constant 0 : index
    %190 = vector.load %arg12[%189, %c0_110] : memref<501x32xf32, #tpu.memory_space<vmem>>, vector<1x32xf32>
    %191 = arith.addf %188, %190 : vector<1x32xf32>
    %c1_111 = arith.constant 1 : index
    %c0_112 = arith.constant 0 : index
    %192 = vector.load %arg13[%c1_111, %c0_112] : memref<8x32xf32, #tpu.memory_space<vmem>>, vector<1x32xf32>
    %193 = arith.addf %191, %192 : vector<1x32xf32>
    %c1_113 = arith.constant 1 : index
    %c2_114 = arith.constant 2 : index
    %194 = memref.load %arg0[%c1_113, %c2_114] : memref<2x8xi32, #tpu.memory_space<smem>>
    %c1_115 = arith.constant 1 : index
    %c2_116 = arith.constant 2 : index
    %195 = memref.load %arg1[%c1_115, %c2_116] : memref<2x8xi32, #tpu.memory_space<smem>>
    %196 = arith.index_cast %194 : i32 to index
    %c0_117 = arith.constant 0 : index
    %197 = vector.load %arg15[%196, %c0_117] : memref<12x32xf32, #tpu.memory_space<vmem>>, vector<1x32xf32>
    %198 = arith.index_cast %195 : i32 to index
    %c0_118 = arith.constant 0 : index
    %199 = vector.load %arg12[%198, %c0_118] : memref<501x32xf32, #tpu.memory_space<vmem>>, vector<1x32xf32>
    %200 = arith.addf %197, %199 : vector<1x32xf32>
    %c2_119 = arith.constant 2 : index
    %c0_120 = arith.constant 0 : index
    %201 = vector.load %arg13[%c2_119, %c0_120] : memref<8x32xf32, #tpu.memory_space<vmem>>, vector<1x32xf32>
    %202 = arith.addf %200, %201 : vector<1x32xf32>
    %c1_121 = arith.constant 1 : index
    %c3_122 = arith.constant 3 : index
    %203 = memref.load %arg0[%c1_121, %c3_122] : memref<2x8xi32, #tpu.memory_space<smem>>
    %c1_123 = arith.constant 1 : index
    %c3_124 = arith.constant 3 : index
    %204 = memref.load %arg1[%c1_123, %c3_124] : memref<2x8xi32, #tpu.memory_space<smem>>
    %205 = arith.index_cast %203 : i32 to index
    %c0_125 = arith.constant 0 : index
    %206 = vector.load %arg15[%205, %c0_125] : memref<12x32xf32, #tpu.memory_space<vmem>>, vector<1x32xf32>
    %207 = arith.index_cast %204 : i32 to index
    %c0_126 = arith.constant 0 : index
    %208 = vector.load %arg12[%207, %c0_126] : memref<501x32xf32, #tpu.memory_space<vmem>>, vector<1x32xf32>
    %209 = arith.addf %206, %208 : vector<1x32xf32>
    %c3_127 = arith.constant 3 : index
    %c0_128 = arith.constant 0 : index
    %210 = vector.load %arg13[%c3_127, %c0_128] : memref<8x32xf32, #tpu.memory_space<vmem>>, vector<1x32xf32>
    %211 = arith.addf %209, %210 : vector<1x32xf32>
    %c1_129 = arith.constant 1 : index
    %c4_130 = arith.constant 4 : index
    %212 = memref.load %arg0[%c1_129, %c4_130] : memref<2x8xi32, #tpu.memory_space<smem>>
    %c1_131 = arith.constant 1 : index
    %c4_132 = arith.constant 4 : index
    %213 = memref.load %arg1[%c1_131, %c4_132] : memref<2x8xi32, #tpu.memory_space<smem>>
    %214 = arith.index_cast %212 : i32 to index
    %c0_133 = arith.constant 0 : index
    %215 = vector.load %arg15[%214, %c0_133] : memref<12x32xf32, #tpu.memory_space<vmem>>, vector<1x32xf32>
    %216 = arith.index_cast %213 : i32 to index
    %c0_134 = arith.constant 0 : index
    %217 = vector.load %arg12[%216, %c0_134] : memref<501x32xf32, #tpu.memory_space<vmem>>, vector<1x32xf32>
    %218 = arith.addf %215, %217 : vector<1x32xf32>
    %c4_135 = arith.constant 4 : index
    %c0_136 = arith.constant 0 : index
    %219 = vector.load %arg13[%c4_135, %c0_136] : memref<8x32xf32, #tpu.memory_space<vmem>>, vector<1x32xf32>
    %220 = arith.addf %218, %219 : vector<1x32xf32>
    %c1_137 = arith.constant 1 : index
    %c5_138 = arith.constant 5 : index
    %221 = memref.load %arg0[%c1_137, %c5_138] : memref<2x8xi32, #tpu.memory_space<smem>>
    %c1_139 = arith.constant 1 : index
    %c5_140 = arith.constant 5 : index
    %222 = memref.load %arg1[%c1_139, %c5_140] : memref<2x8xi32, #tpu.memory_space<smem>>
    %223 = arith.index_cast %221 : i32 to index
    %c0_141 = arith.constant 0 : index
    %224 = vector.load %arg15[%223, %c0_141] : memref<12x32xf32, #tpu.memory_space<vmem>>, vector<1x32xf32>
    %225 = arith.index_cast %222 : i32 to index
    %c0_142 = arith.constant 0 : index
    %226 = vector.load %arg12[%225, %c0_142] : memref<501x32xf32, #tpu.memory_space<vmem>>, vector<1x32xf32>
    %227 = arith.addf %224, %226 : vector<1x32xf32>
    %c5_143 = arith.constant 5 : index
    %c0_144 = arith.constant 0 : index
    %228 = vector.load %arg13[%c5_143, %c0_144] : memref<8x32xf32, #tpu.memory_space<vmem>>, vector<1x32xf32>
    %229 = arith.addf %227, %228 : vector<1x32xf32>
    %c1_145 = arith.constant 1 : index
    %c6_146 = arith.constant 6 : index
    %230 = memref.load %arg0[%c1_145, %c6_146] : memref<2x8xi32, #tpu.memory_space<smem>>
    %c1_147 = arith.constant 1 : index
    %c6_148 = arith.constant 6 : index
    %231 = memref.load %arg1[%c1_147, %c6_148] : memref<2x8xi32, #tpu.memory_space<smem>>
    %232 = arith.index_cast %230 : i32 to index
    %c0_149 = arith.constant 0 : index
    %233 = vector.load %arg15[%232, %c0_149] : memref<12x32xf32, #tpu.memory_space<vmem>>, vector<1x32xf32>
    %234 = arith.index_cast %231 : i32 to index
    %c0_150 = arith.constant 0 : index
    %235 = vector.load %arg12[%234, %c0_150] : memref<501x32xf32, #tpu.memory_space<vmem>>, vector<1x32xf32>
    %236 = arith.addf %233, %235 : vector<1x32xf32>
    %c6_151 = arith.constant 6 : index
    %c0_152 = arith.constant 0 : index
    %237 = vector.load %arg13[%c6_151, %c0_152] : memref<8x32xf32, #tpu.memory_space<vmem>>, vector<1x32xf32>
    %238 = arith.addf %236, %237 : vector<1x32xf32>
    %c1_153 = arith.constant 1 : index
    %c7_154 = arith.constant 7 : index
    %239 = memref.load %arg0[%c1_153, %c7_154] : memref<2x8xi32, #tpu.memory_space<smem>>
    %c1_155 = arith.constant 1 : index
    %c7_156 = arith.constant 7 : index
    %240 = memref.load %arg1[%c1_155, %c7_156] : memref<2x8xi32, #tpu.memory_space<smem>>
    %241 = arith.index_cast %239 : i32 to index
    %c0_157 = arith.constant 0 : index
    %242 = vector.load %arg15[%241, %c0_157] : memref<12x32xf32, #tpu.memory_space<vmem>>, vector<1x32xf32>
    %243 = arith.index_cast %240 : i32 to index
    %c0_158 = arith.constant 0 : index
    %244 = vector.load %arg12[%243, %c0_158] : memref<501x32xf32, #tpu.memory_space<vmem>>, vector<1x32xf32>
    %245 = arith.addf %242, %244 : vector<1x32xf32>
    %c7_159 = arith.constant 7 : index
    %c0_160 = arith.constant 0 : index
    %246 = vector.load %arg13[%c7_159, %c0_160] : memref<8x32xf32, #tpu.memory_space<vmem>>, vector<1x32xf32>
    %247 = arith.addf %245, %246 : vector<1x32xf32>
    %248 = tpu.concatenate %184, %193, %202, %211, %220, %229, %238, %247 in 0 : vector<1x32xf32>, vector<1x32xf32>, vector<1x32xf32>, vector<1x32xf32>, vector<1x32xf32>, vector<1x32xf32>, vector<1x32xf32>, vector<1x32xf32> -> vector<8x32xf32>
    %c1_161 = arith.constant 1 : index
    %c0_162 = arith.constant 0 : index
    %c0_163 = arith.constant 0 : index
    %249 = vector.load %arg14[%c1_161, %c0_162, %c0_163] : memref<2x8x32xf32, #tpu.memory_space<vmem>>, vector<1x8x32xf32>
    %250 = vector.shape_cast %249 : vector<1x8x32xf32> to vector<8x32xf32>
    %251 = vector.shape_cast %248 : vector<8x32xf32> to vector<1x8x32xf32>
    tpu.vector_store %arg14[%c1_161, %c0_162, %c0_163], %251 {strides = array<i32>} : memref<2x8x32xf32, #tpu.memory_space<vmem>>, vector<1x8x32xf32>,
    return
  }
}

</mosaic_0001>

<llo_original>
// kernel: node_embedding_forward.1
$region0: #{node_embedding_forward.1}
  #allocation0 [shape = 'u32[]', space=smem, size = 0x4, offset = 0x4, fixed_abs, tag = 'smem constant byte address 0x4 - core index']
  #allocation1 [shape = 'u32[144,128]{1,0:T(1,128)}', space=vmem, size = 0x12000, scoped, tag = 'internal scratch']
  #allocation2 [shape = 'f32[12,32]{1,0:T(8,128)}', space=vmem, size = 0x2000, scoped, tag = 'scratch operand']
  %s0 = inlined_call_operand.vmem [shape: s32[2,8], index: 0, kind: input, shape index: {}]
  %s1 = inlined_call_operand.vmem [shape: s32[2,8], index: 1, kind: input, shape index: {}]
  %s2 = inlined_call_operand.vmem [shape: f32[12,10], index: 2, kind: input, shape index: {}]
  %s3 = inlined_call_operand.vmem [shape: f32[10,128], index: 3, kind: input, shape index: {}]
  %s4 = inlined_call_operand.vmem [shape: f32[1,64], index: 4, kind: input, shape index: {}]
  %s5 = inlined_call_operand.vmem [shape: f32[1,64], index: 5, kind: input, shape index: {}]
  %s6 = inlined_call_operand.vmem [shape: f32[1,64], index: 6, kind: input, shape index: {}]
  %s7 = inlined_call_operand.vmem [shape: f32[1,64], index: 7, kind: input, shape index: {}]
  %s8 = inlined_call_operand.vmem [shape: f32[1,32], index: 8, kind: input, shape index: {}]
  %s9 = inlined_call_operand.vmem [shape: f32[24,1], index: 9, kind: input, shape index: {}]
  %s10 = inlined_call_operand.vmem [shape: f32[24,24], index: 10, kind: input, shape index: {}]
  %s11 = inlined_call_operand.vmem [shape: f32[12,24], index: 11, kind: input, shape index: {}]
  %s12 = inlined_call_operand.vmem [shape: f32[501,32], index: 12, kind: input, shape index: {}]
  %s13 = inlined_call_operand.vmem [shape: f32[8,32], index: 13, kind: input, shape index: {}]
  %s14 = inlined_call_operand.hbm [shape: f32[2,8,32], index: 14, kind: output, shape index: {}]
  %s15 = sld [smem:[#allocation0]]
  $region74: #{node_embedding_forward.1} parent=0
    _
  %s17 = ssub.s32 1, %s15
  %s18 = scalar_select 0, %s17, %s15
  $region1: #{node_embedding_forward.1} parent=0
    #allocation3 [shape = 'u8[1024]{0}', space=smem, size = 0x400, scoped, tag = 'input window, operand 0, single buffered']
    #allocation4 [shape = 's32[1]{0}', space=sflag, size = 0x4, scoped, tag = 'scoped memory for node_embedding_forward.1']
    #allocation5 [shape = 's32[1]{0}', space=sflag, size = 0x4, scoped, tag = 'scoped memory for node_embedding_forward.1']
    #allocation6 [shape = 'u8[1024]{0}', space=smem, size = 0x400, scoped, tag = 'input window, operand 1, single buffered']
    #allocation7 [shape = 's32[1]{0}', space=sflag, size = 0x4, scoped, tag = 'scoped memory for node_embedding_forward.1']
    #allocation8 [shape = 'u8[8192]{0}', space=vmem, size = 0x2000, scoped, tag = 'output window, operand 0, single buffered']
    %19 = vsyncpa [#allocation5], 0
    %20 = vsyncpa [#allocation7], 0
    %21 = vsyncpa [#allocation4], 0
    // Predicated region
    $region2: #{node_embedding_forward.1} parent=1 // pred_check
      _
    $region3: #{node_embedding_forward.1} parent=1 // pred_check_branch
      %23 = sbr.rel (0) target = $region5
    $region4: #{node_embedding_forward.1} parent=1 // pred_region
      %s25 = ssub.s32 32, 32
      %26 = vsyncadd [#allocation5], %s25
      %s28 = sshll.u32 %s0, 4
      %s29 = int_to_ptr.vmem [resolvable:$true] %s28
      %31 = dma.vmem_to_smem %s29, 32, [#allocation3], [#allocation5]
    $region5: #{node_embedding_forward.1} parent=1 // pred_fallthru
      _
    // Predicated region
    $region6: #{node_embedding_forward.1} parent=1 // pred_check
      _
    $region7: #{node_embedding_forward.1} parent=1 // pred_check_branch
      %33 = sbr.rel (0) target = $region9
    $region8: #{node_embedding_forward.1} parent=1 // pred_region
      %s35 = ssub.s32 32, 32
      %36 = vsyncadd [#allocation7], %s35
      %s38 = sshll.u32 %s1, 4
      %s39 = int_to_ptr.vmem [resolvable:$true] %s38
      %41 = dma.vmem_to_smem %s39, 32, [#allocation6], [#allocation7]
    $region9: #{node_embedding_forward.1} parent=1 // pred_fallthru
      _
    // Predicated region
    $region10: #{node_embedding_forward.1} parent=1 // pred_check
      _
    $region11: #{node_embedding_forward.1} parent=1 // pred_check_branch
      %43 = sbr.rel (0) target = $region13
    $region12: #{node_embedding_forward.1} parent=1 // pred_region
      _
    $region13: #{node_embedding_forward.1} parent=1 // pred_fallthru
      _
    // Predicated region
    $region14: #{node_embedding_forward.1} parent=1 // pred_check
      _
    $region15: #{node_embedding_forward.1} parent=1 // pred_check_branch
      %45 = sbr.rel (0) target = $region17
    $region16: #{node_embedding_forward.1} parent=1 // pred_region
      _
    $region17: #{node_embedding_forward.1} parent=1 // pred_fallthru
      _
    // Predicated region
    $region18: #{node_embedding_forward.1} parent=1 // pred_check
      _
    $region19: #{node_embedding_forward.1} parent=1 // pred_check_branch
      %47 = sbr.rel (0) target = $region21
    $region20: #{node_embedding_forward.1} parent=1 // pred_region
      _
    $region21: #{node_embedding_forward.1} parent=1 // pred_fallthru
      _
    // Predicated region
    $region22: #{node_embedding_forward.1} parent=1 // pred_check
      _
    $region23: #{node_embedding_forward.1} parent=1 // pred_check_branch
      %49 = sbr.rel (0) target = $region25
    $region24: #{node_embedding_forward.1} parent=1 // pred_region
      _
    $region25: #{node_embedding_forward.1} parent=1 // pred_fallthru
      _
    // Predicated region
    $region26: #{node_embedding_forward.1} parent=1 // pred_check
      _
    $region27: #{node_embedding_forward.1} parent=1 // pred_check_branch
      %51 = sbr.rel (0) target = $region29
    $region28: #{node_embedding_forward.1} parent=1 // pred_region
      _
    $region29: #{node_embedding_forward.1} parent=1 // pred_fallthru
      _
    // Predicated region
    $region30: #{node_embedding_forward.1} parent=1 // pred_check
      _
    $region31: #{node_embedding_forward.1} parent=1 // pred_check_branch
      %53 = sbr.rel (0) target = $region33
    $region32: #{node_embedding_forward.1} parent=1 // pred_region
      _
    $region33: #{node_embedding_forward.1} parent=1 // pred_fallthru
      _
    // Predicated region
    $region34: #{node_embedding_forward.1} parent=1 // pred_check
      _
    $region35: #{node_embedding_forward.1} parent=1 // pred_check_branch
      %55 = sbr.rel (0) target = $region37
    $region36: #{node_embedding_forward.1} parent=1 // pred_region
      _
    $region37: #{node_embedding_forward.1} parent=1 // pred_fallthru
      _
    // Predicated region
    $region38: #{node_embedding_forward.1} parent=1 // pred_check
      _
    $region39: #{node_embedding_forward.1} parent=1 // pred_check_branch
      %57 = sbr.rel (0) target = $region41
    $region40: #{node_embedding_forward.1} parent=1 // pred_region
      _
    $region41: #{node_embedding_forward.1} parent=1 // pred_fallthru
      _
    // Predicated region
    $region42: #{node_embedding_forward.1} parent=1 // pred_check
      _
    $region43: #{node_embedding_forward.1} parent=1 // pred_check_branch
      %59 = sbr.rel (0) target = $region45
    $region44: #{node_embedding_forward.1} parent=1 // pred_region
      _
    $region45: #{node_embedding_forward.1} parent=1 // pred_fallthru
      _
    // Predicated region
    $region46: #{node_embedding_forward.1} parent=1 // pred_check
      _
    $region47: #{node_embedding_forward.1} parent=1 // pred_check_branch
      %61 = sbr.rel (0) target = $region49
    $region48: #{node_embedding_forward.1} parent=1 // pred_region
      _
    $region49: #{node_embedding_forward.1} parent=1 // pred_fallthru
      _
    // Predicated region
    $region50: #{node_embedding_forward.1} parent=1 // pred_check
      _
    $region51: #{node_embedding_forward.1} parent=1 // pred_check_branch
      %63 = sbr.rel (0) target = $region53
    $region52: #{node_embedding_forward.1} parent=1 // pred_region
      _
    $region53: #{node_embedding_forward.1} parent=1 // pred_fallthru
      _
    // Predicated region
    $region54: #{node_embedding_forward.1} parent=1 // pred_check
      _
    $region55: #{node_embedding_forward.1} parent=1 // pred_check_branch
      %65 = sbr.rel (0) target = $region57
    $region56: #{node_embedding_forward.1} parent=1 // pred_region
      _
    $region57: #{node_embedding_forward.1} parent=1 // pred_fallthru
      _
    // Predicated region
    $region58: #{node_embedding_forward.1} parent=1 // pred_check
      _
    $region59: #{node_embedding_forward.1} parent=1 // pred_check_branch
      %67 = sbr.rel (0) target = $region61
    $region60: #{node_embedding_forward.1} parent=1 // pred_region
      %68 = dma.done [#allocation5], 32
    $region61: #{node_embedding_forward.1} parent=1 // pred_fallthru
      _
    // Predicated region
    $region62: #{node_embedding_forward.1} parent=1 // pred_check
      _
    $region63: #{node_embedding_forward.1} parent=1 // pred_check_branch
      %70 = sbr.rel (0) target = $region65
    $region64: #{node_embedding_forward.1} parent=1 // pred_region
      %71 = dma.done [#allocation7], 32
    $region65: #{node_embedding_forward.1} parent=1 // pred_fallthru
      _
    %72 = sfence
    %v73 = vld [vmem:[%s2] sm:$0xff]
    %v74 = vld [vmem:[%s2 + $0x8] sm:$0xf]
    %v75 = vld [vmem:[%s3] sm:$0xff]
    %v76 = vld [vmem:[%s3 + $0x8] sm:$0x3]
    %vm77 = vcmask 80896
    %v79 = vsel %vm77, %v73, 0
    %v82 = vsel %vm77, %v74, 0
    %vm84 = vcmask 1041408
    %v86 = vsel %vm84, %v76, 0
    %88 = vmatprep.subr.mxu0 0.0
    %89 = vmatpush1.msra.mxu0 %v75
    %90 = vmatprep.subr.mxu0 0.0
    %91 = vmatpush1.msra.mxu0 %v86
    %92 = vmatprep.subr.mxu0 0.0
    %93 = vmatpush1.msra.mxu0 0.0
    %94 = vmatprep.subr.mxu0 0.0
    %95 = vmatpush1.msra.mxu0 0.0
    %96 = vmatprep.subr.mxu0 0.0
    %97 = vmatpush1.msra.mxu0 0.0
    %98 = vmatprep.subr.mxu0 0.0
    %99 = vmatpush1.msra.mxu0 0.0
    %100 = vmatprep.subr.mxu0 0.0
    %101 = vmatpush1.msra.mxu0 0.0
    %102 = vmatprep.subr.mxu0 0.0
    %103 = vmatpush1.msra.mxu0 0.0
    %104 = vmatprep.subr.mxu0 0.0
    %105 = vmatpush1.msra.mxu0 0.0
    %106 = vmatprep.subr.mxu0 0.0
    %107 = vmatpush1.msra.mxu0 0.0
    %108 = vmatprep.subr.mxu0 0.0
    %109 = vmatpush1.msra.mxu0 0.0
    %110 = vmatprep.subr.mxu0 0.0
    %111 = vmatpush1.msra.mxu0 0.0
    %112 = vmatprep.subr.mxu0 0.0
    %113 = vmatpush1.msra.mxu0 0.0
    %114 = vmatprep.subr.mxu0 0.0
    %115 = vmatpush1.msra.mxu0 0.0
    %116 = vmatprep.subr.mxu0 0.0
    %117 = vmatpush1.msra.mxu0 0.0
    %118 = vmatprep.subr.mxu0 0.0
    %119 = vmatpush1.msra.mxu0 0.0
    %120 = vmatprep.subr.mxu0 0.0
    %121 = vmatpush1.msra.mxu0 0.0
    %122 = vmatprep.subr.mxu0 0.0
    %123 = vmatpush1.msra.mxu0 0.0
    %124 = vmatprep.subr.mxu0 0.0
    %125 = vmatpush1.msra.mxu0 0.0
    %126 = vmatprep.subr.mxu0 0.0
    %127 = vmatpush1.msra.mxu0 0.0
    %128 = vmatprep.subr.mxu0 0.0
    %129 = vmatpush1.msra.mxu0 0.0
    %130 = vmatprep.subr.mxu0 0.0
    %131 = vmatpush1.msra.mxu0 0.0
    %132 = vmatprep.subr.mxu0 0.0
    %133 = vmatpush1.msra.mxu0 0.0
    %134 = vmatprep.subr.mxu0 0.0
    %135 = vmatpush1.msra.mxu0 0.0
    %136 = vmatprep.subr.mxu0 0.0
    %137 = vmatpush1.msra.mxu0 0.0
    %138 = vmatprep.subr.mxu0 0.0
    %139 = vmatpush1.msra.mxu0 0.0
    %140 = vmatprep.subr.mxu0 0.0
    %141 = vmatpush1.msra.mxu0 0.0
    %142 = vmatprep.subr.mxu0 0.0
    %143 = vmatpush1.msra.mxu0 0.0
    %144 = vmatprep.subr.mxu0 0.0
    %145 = vmatpush1.msra.mxu0 0.0
    %146 = vmatprep.subr.mxu0 0.0
    %147 = vmatpush1.msra.mxu0 0.0
    %148 = vmatprep.subr.mxu0 0.0
    %149 = vmatpush1.msra.mxu0 0.0
    %150 = vmatprep.subr.mxu0 0.0
    %151 = vmatpush1.msra.mxu0 0.0
    %152 = vmatprep.mubr.f32.mxu0 0.0
    %153 = vmatmul.mubr.f32.gmra.mrb[0].mxu0 %v79
    %v154 = vpop.f32.mrb[0].mxu0
    %v155 = vadd.f32 0.0, %v154
    %v156 = vpop.f32.mrb[0].mxu0
    %157 = vmatprep.mubr.f32.mxu0 0.0
    %158 = vmatmul.mubr.f32.gmra.mrb[0].mxu0 %v82
    %v159 = vpop.f32.mrb[0].mxu0
    %v160 = vadd.f32 0.0, %v159
    %v161 = vpop.f32.mrb[0].mxu0
    %162 = vdwg.mxu0
    %v163 = vld [vmem:[%s5] sm:$0x1]
    %v165 = vlaneseq
    %v166 = vshrl.u32 %v165, 7
    %v167 = vsub.s32 0, %v166
    %v168 = vrot.slane %v163, %v167
    %v170 = vmul.f32 %v155, %v168
    %v171 = vmul.f32 %v160, %v168
    %vm172 = vcmask 261120
    %v173 = vsel %vm172, %v170, 0.0
    %174 = vadd.xlane.f32.xlu0 %v173
    %v175 = vpop.xlane.xlu0 %174
    %vm176 = vcmask 257024
    %v177 = vsel %vm176, %v171, 0.0
    %178 = vadd.xlane.f32.xlu0 %v177
    %v179 = vpop.xlane.xlu0 %178
    %182 = vrot.lane.b32.xlu0 %v170, 96
    %v183 = vpop.permute.xlu0 %182
    %184 = vrot.lane.b32.xlu0 %v171, 96
    %v185 = vpop.permute.xlu0 %184
    %v188 = vsel %vm172, %v183, 0.0
    %189 = vadd.xlane.f32.xlu0 %v188
    %v190 = vpop.xlane.xlu0 %189
    %v191 = vsel %vm176, %v185, 0.0
    %192 = vadd.xlane.f32.xlu0 %v191
    %v193 = vpop.xlane.xlu0 %192
    %vm194 = vcmask 7168
    %v195 = vsel %vm194, %v175, %v190
    %v196 = vsel %vm194, %v179, %v193
    %v197 = vld [vmem:[%s6] sm:$0x1]
    %v199 = vlaneseq
    %v200 = vshrl.u32 %v199, 7
    %v201 = vsub.s32 0, %v200
    %v202 = vrot.slane %v197, %v201
    %v204 = vmul.f32 %v155, %v202
    %v205 = vmul.f32 %v160, %v202
    %v206 = vsel %vm172, %v204, 0.0
    %207 = vadd.xlane.f32.xlu0 %v206
    %v208 = vpop.xlane.xlu0 %207
    %v209 = vsel %vm176, %v205, 0.0
    %210 = vadd.xlane.f32.xlu0 %v209
    %v211 = vpop.xlane.xlu0 %210
    %214 = vrot.lane.b32.xlu0 %v204, 96
    %v215 = vpop.permute.xlu0 %214
    %216 = vrot.lane.b32.xlu0 %v205, 96
    %v217 = vpop.permute.xlu0 %216
    %v220 = vsel %vm172, %v215, 0.0
    %221 = vadd.xlane.f32.xlu0 %v220
    %v222 = vpop.xlane.xlu0 %221
    %v223 = vsel %vm176, %v217, 0.0
    %224 = vadd.xlane.f32.xlu0 %v223
    %v225 = vpop.xlane.xlu0 %224
    %v226 = vsel %vm194, %v208, %v222
    %v227 = vsel %vm194, %v211, %v225
    %v228 = vld [vmem:[%s9] sm:$0xff]
    %v229 = vld [vmem:[%s9 + $0x8] sm:$0xff]
    %v230 = vld [vmem:[%s9 + $0x10] sm:$0xff]
    %v231 = vld [vmem:[%s4] sm:$0x1]
    %233 = vset.pattern.permute.xlu0 0
    %234 = vperm.xlu0 %233, %v228
    %v235 = vpop.permute.xlu0 %234
    %238 = vset.pattern.permute.xlu0 0
    %239 = vperm.xlu0 %238, %v229
    %v240 = vpop.permute.xlu0 %239
    %243 = vset.pattern.permute.xlu0 0
    %244 = vperm.xlu0 %243, %v230
    %v245 = vpop.permute.xlu0 %244
    %v248 = vlaneseq
    %v249 = vshrl.u32 %v248, 7
    %v250 = vsub.s32 0, %v249
    %v251 = vrot.slane %v231, %v250
    %v253 = vmul.f32 %v235, %v251
    %v254 = vmul.f32 %v240, %v251
    %v255 = vmul.f32 %v245, %v251
    %v256 = vld [vmem:[%s7] sm:$0x1]
    %v258 = vlaneseq
    %v259 = vshrl.u32 %v258, 7
    %v260 = vsub.s32 0, %v259
    %v261 = vrot.slane %v256, %v260
    %v263 = vmul.f32 %v253, %v261
    %v264 = vmul.f32 %v254, %v261
    %v265 = vmul.f32 %v255, %v261
    %v266 = vsel %vm172, %v263, 0.0
    %267 = vadd.xlane.f32.xlu0 %v266
    %v268 = vpop.xlane.xlu0 %267
    %v269 = vsel %vm172, %v264, 0.0
    %270 = vadd.xlane.f32.xlu0 %v269
    %v271 = vpop.xlane.xlu0 %270
    %v272 = vsel %vm172, %v265, 0.0
    %273 = vadd.xlane.f32.xlu0 %v272
    %v274 = vpop.xlane.xlu0 %273
    %278 = vrot.lane.b32.xlu0 %v263, 96
    %v279 = vpop.permute.xlu0 %278
    %280 = vrot.lane.b32.xlu0 %v264, 96
    %v281 = vpop.permute.xlu0 %280
    %282 = vrot.lane.b32.xlu0 %v265, 96
    %v283 = vpop.permute.xlu0 %282
    %v287 = vsel %vm172, %v279, 0.0
    %288 = vadd.xlane.f32.xlu0 %v287
    %v289 = vpop.xlane.xlu0 %288
    %v290 = vsel %vm172, %v281, 0.0
    %291 = vadd.xlane.f32.xlu0 %v290
    %v292 = vpop.xlane.xlu0 %291
    %v293 = vsel %vm172, %v283, 0.0
    %294 = vadd.xlane.f32.xlu0 %v293
    %v295 = vpop.xlane.xlu0 %294
    %v296 = vsel %vm194, %v268, %v289
    %v297 = vsel %vm194, %v271, %v292
    %v298 = vsel %vm194, %v274, %v295
    %301 = vrot.lane.b32.xlu0 %v195, 64
    %v302 = vpop.permute.xlu0 %301
    %303 = vrot.lane.b32.xlu0 %v196, 64
    %v304 = vpop.permute.xlu0 %303
    %vm307 = vcmask 523264
    %v308 = vsel %vm307, %v155, %v302
    %v309 = vsel %vm307, %v160, %v304
    %312 = vrot.lane.b32.xlu0 %v226, 64
    %v313 = vpop.permute.xlu0 %312
    %314 = vrot.lane.b32.xlu0 %v227, 64
    %v315 = vpop.permute.xlu0 %314
    %v318 = vsel %vm307, 0.0, %v313
    %v319 = vsel %vm307, 0.0, %v315
    %vm322 = vcmask 1043456
    %v323 = vrot.slane %v318, 4
    %v324 = vrot.slane %v319, 4
    %v325 = vsel %vm322, %v323, %v324
    %v328 = vsel %vm322, %v309, %v323
    %v329 = vld [vmem:[%s10] sm:$0xff]
    %v330 = vld [vmem:[%s10 + $0x8] sm:$0xff]
    %v331 = vld [vmem:[%s10 + $0x10] sm:$0xff]
    %vm332 = vcmask 195584
    %v334 = vsel %vm332, %v329, 0
    %v337 = vsel %vm332, %v330, 0
    %v340 = vsel %vm332, %v331, 0
    %342 = vmatprep.subr.mxu0 0.0
    %343 = vmatpush1.msra.mxu0 %v308
    %344 = vmatprep.subr.mxu0 0.0
    %345 = vmatpush1.msra.mxu0 %v328
    %346 = vmatprep.subr.mxu0 0.0
    %347 = vmatpush1.msra.mxu0 %v325
    %348 = vmatprep.subr.mxu0 0.0
    %349 = vmatpush1.msra.mxu0 0.0
    %350 = vmatprep.subr.mxu0 0.0
    %351 = vmatpush1.msra.mxu0 0.0
    %352 = vmatprep.subr.mxu0 0.0
    %353 = vmatpush1.msra.mxu0 0.0
    %354 = vmatprep.subr.mxu0 0.0
    %355 = vmatpush1.msra.mxu0 0.0
    %356 = vmatprep.subr.mxu0 0.0
    %357 = vmatpush1.msra.mxu0 0.0
    %358 = vmatprep.subr.mxu0 0.0
    %359 = vmatpush1.msra.mxu0 0.0
    %360 = vmatprep.subr.mxu0 0.0
    %361 = vmatpush1.msra.mxu0 0.0
    %362 = vmatprep.subr.mxu0 0.0
    %363 = vmatpush1.msra.mxu0 0.0
    %364 = vmatprep.subr.mxu0 0.0
    %365 = vmatpush1.msra.mxu0 0.0
    %366 = vmatprep.subr.mxu0 0.0
    %367 = vmatpush1.msra.mxu0 0.0
    %368 = vmatprep.subr.mxu0 0.0
    %369 = vmatpush1.msra.mxu0 0.0
    %370 = vmatprep.subr.mxu0 0.0
    %371 = vmatpush1.msra.mxu0 0.0
    %372 = vmatprep.subr.mxu0 0.0
    %373 = vmatpush1.msra.mxu0 0.0
    %374 = vmatprep.subr.mxu0 0.0
    %375 = vmatpush1.msra.mxu0 0.0
    %376 = vmatprep.subr.mxu0 0.0
    %377 = vmatpush1.msra.mxu0 0.0
    %378 = vmatprep.subr.mxu0 0.0
    %379 = vmatpush1.msra.mxu0 0.0
    %380 = vmatprep.subr.mxu0 0.0
    %381 = vmatpush1.msra.mxu0 0.0
    %382 = vmatprep.subr.mxu0 0.0
    %383 = vmatpush1.msra.mxu0 0.0
    %384 = vmatprep.subr.mxu0 0.0
    %385 = vmatpush1.msra.mxu0 0.0
    %386 = vmatprep.subr.mxu0 0.0
    %387 = vmatpush1.msra.mxu0 0.0
    %388 = vmatprep.subr.mxu0 0.0
    %389 = vmatpush1.msra.mxu0 0.0
    %390 = vmatprep.subr.mxu0 0.0
    %391 = vmatpush1.msra.mxu0 0.0
    %392 = vmatprep.subr.mxu0 0.0
    %393 = vmatpush1.msra.mxu0 0.0
    %394 = vmatprep.subr.mxu0 0.0
    %395 = vmatpush1.msra.mxu0 0.0
    %396 = vmatprep.subr.mxu0 0.0
    %397 = vmatpush1.msra.mxu0 0.0
    %398 = vmatprep.subr.mxu0 0.0
    %399 = vmatpush1.msra.mxu0 0.0
    %400 = vmatprep.subr.mxu0 0.0
    %401 = vmatpush1.msra.mxu0 0.0
    %402 = vmatprep.subr.mxu0 0.0
    %403 = vmatpush1.msra.mxu0 0.0
    %404 = vmatprep.subr.mxu0 0.0
    %405 = vmatpush1.msra.mxu0 0.0
    %406 = vmatprep.mubr.f32.mxu0 0.0
    %407 = vmatmul.mubr.f32.gmra.mrb[0].mxu0 %v334
    %v408 = vpop.f32.mrb[0].mxu0
    %v409 = vadd.f32 0.0, %v408
    %v410 = vpop.f32.mrb[0].mxu0
    %411 = vmatprep.mubr.f32.mxu0 0.0
    %412 = vmatmul.mubr.f32.gmra.mrb[0].mxu0 %v337
    %v413 = vpop.f32.mrb[0].mxu0
    %v414 = vadd.f32 0.0, %v413
    %v415 = vpop.f32.mrb[0].mxu0
    %416 = vmatprep.mubr.f32.mxu0 0.0
    %417 = vmatmul.mubr.f32.gmra.mrb[0].mxu0 %v340
    %v418 = vpop.f32.mrb[0].mxu0
    %v419 = vadd.f32 0.0, %v418
    %v420 = vpop.f32.mrb[0].mxu0
    %421 = vdwg.mxu0
    %425 = vrot.lane.b32.xlu0 %v296, 64
    %v426 = vpop.permute.xlu0 %425
    %427 = vrot.lane.b32.xlu0 %v297, 64
    %v428 = vpop.permute.xlu0 %427
    %429 = vrot.lane.b32.xlu0 %v298, 64
    %v430 = vpop.permute.xlu0 %429
    %v434 = vadd.f32 %v409, %v426
    %v435 = vadd.f32 %v414, %v428
    %v436 = vadd.f32 %v419, %v430
    %vm437 = vcmp.ge.f32.partialorder %v434, 0.0
    %vm438 = vcmp.ge.f32.partialorder %v435, 0.0
    %vm439 = vcmp.ge.f32.partialorder %v436, 0.0
    %v440 = vmul.f32 %v434, 0.2
    %v441 = vmul.f32 %v435, 0.2
    %v442 = vmul.f32 %v436, 0.2
    %v443 = vsel %vm437, %v434, %v440
    %v444 = vsel %vm438, %v435, %v441
    %v445 = vsel %vm439, %v436, %v442
    %vm446 = vcmask 540160
    %v447 = vsel %vm446, %v443, -inf
    %v448 = vsel %vm446, %v444, -inf
    %v449 = vsel %vm446, %v445, -inf
    %v450 = vmax.f32 %v447, %v448
    %v451 = vmax.f32 %v450, %v449
    %452 = vmax.xlane.f32.xlu0 %v451
    %v453 = vpop.xlane.xlu0 %452
    %v454 = vrot.slane %v453, 4
    %v455 = vmax.f32 %v453, %v454
    %v456 = vrot.slane %v455, 2
    %v457 = vmax.f32 %v455, %v456
    %v458 = vrot.slane %v457, 1
    %v459 = vmax.f32 %v457, %v458
    %s460 = vtos %v459
    %v461 = vstv %s460
    %v462 = vsub.f32 %v443, %v461
    %v463 = vsub.f32 %v444, %v461
    %v464 = vsub.f32 %v445, %v461
    %v465 = vmul.f32 %v462, 1.442695
    %v466 = vpow.pop %v465
    %v467 = vmul.f32 %v463, 1.442695
    %v468 = vpow.pop %v467
    %v469 = vmul.f32 %v464, 1.442695
    %v470 = vpow.pop %v469
    %472 = vset.pattern.permute.xlu0 64
    %473 = vperm.xlu0 %472, %v466
    %v474 = vpop.permute.xlu0 %473
    %477 = vset.pattern.permute.xlu0 64
    %478 = vperm.xlu0 %477, %v468
    %v479 = vpop.permute.xlu0 %478
    %482 = vset.pattern.permute.xlu0 64
    %483 = vperm.xlu0 %482, %v470
    %v484 = vpop.permute.xlu0 %483
    %v486 = vmul.f32 %v409, %v474
    %v487 = vmul.f32 %v414, %v479
    %v488 = vmul.f32 %v419, %v484
    %489 = vset.pattern.permute.xlu0 65
    %490 = vperm.xlu0 %489, %v466
    %v491 = vpop.permute.xlu0 %490
    %493 = vset.pattern.permute.xlu0 65
    %494 = vperm.xlu0 %493, %v468
    %v495 = vpop.permute.xlu0 %494
    %497 = vset.pattern.permute.xlu0 65
    %498 = vperm.xlu0 %497, %v470
    %v499 = vpop.permute.xlu0 %498
    %v501 = vmul.f32 %v409, %v491
    %v502 = vmul.f32 %v414, %v495
    %v503 = vmul.f32 %v419, %v499
    %v504 = vsel %vm172, %v486, %v501
    %v505 = vsel %vm172, %v487, %v502
    %v506 = vsel %vm172, %v488, %v503
    %v507 = vld [vmem:[%s11] sm:$0xff]
    %v508 = vld [vmem:[%s11 + $0x8] sm:$0xf]
    %v509 = vsel %vm307, %v504, %v466
    %v510 = vsel %vm307, %v505, %v468
    %v511 = vsel %vm307, %v506, %v470
    %v513 = vsel %vm332, %v507, 0
    %v516 = vsel %vm332, %v508, 0
    %518 = vmatprep.subr.mxu0 0.0
    %519 = vmatpush1.msra.mxu0 %v509
    %520 = vmatprep.subr.mxu0 0.0
    %521 = vmatpush1.msra.mxu0 %v510
    %522 = vmatprep.subr.mxu0 0.0
    %523 = vmatpush1.msra.mxu0 %v511
    %524 = vmatprep.subr.mxu0 0.0
    %525 = vmatpush1.msra.mxu0 0.0
    %526 = vmatprep.subr.mxu0 0.0
    %527 = vmatpush1.msra.mxu0 0.0
    %528 = vmatprep.subr.mxu0 0.0
    %529 = vmatpush1.msra.mxu0 0.0
    %530 = vmatprep.subr.mxu0 0.0
    %531 = vmatpush1.msra.mxu0 0.0
    %532 = vmatprep.subr.mxu0 0.0
    %533 = vmatpush1.msra.mxu0 0.0
    %534 = vmatprep.subr.mxu0 0.0
    %535 = vmatpush1.msra.mxu0 0.0
    %536 = vmatprep.subr.mxu0 0.0
    %537 = vmatpush1.msra.mxu0 0.0
    %538 = vmatprep.subr.mxu0 0.0
    %539 = vmatpush1.msra.mxu0 0.0
    %540 = vmatprep.subr.mxu0 0.0
    %541 = vmatpush1.msra.mxu0 0.0
    %542 = vmatprep.subr.mxu0 0.0
    %543 = vmatpush1.msra.mxu0 0.0
    %544 = vmatprep.subr.mxu0 0.0
    %545 = vmatpush1.msra.mxu0 0.0
    %546 = vmatprep.subr.mxu0 0.0
    %547 = vmatpush1.msra.mxu0 0.0
    %548 = vmatprep.subr.mxu0 0.0
    %549 = vmatpush1.msra.mxu0 0.0
    %550 = vmatprep.subr.mxu0 0.0
    %551 = vmatpush1.msra.mxu0 0.0
    %552 = vmatprep.subr.mxu0 0.0
    %553 = vmatpush1.msra.mxu0 0.0
    %554 = vmatprep.subr.mxu0 0.0
    %555 = vmatpush1.msra.mxu0 0.0
    %556 = vmatprep.subr.mxu0 0.0
    %557 = vmatpush1.msra.mxu0 0.0
    %558 = vmatprep.subr.mxu0 0.0
    %559 = vmatpush1.msra.mxu0 0.0
    %560 = vmatprep.subr.mxu0 0.0
    %561 = vmatpush1.msra.mxu0 0.0
    %562 = vmatprep.subr.mxu0 0.0
    %563 = vmatpush1.msra.mxu0 0.0
    %564 = vmatprep.subr.mxu0 0.0
    %565 = vmatpush1.msra.mxu0 0.0
    %566 = vmatprep.subr.mxu0 0.0
    %567 = vmatpush1.msra.mxu0 0.0
    %568 = vmatprep.subr.mxu0 0.0
    %569 = vmatpush1.msra.mxu0 0.0
    %570 = vmatprep.subr.mxu0 0.0
    %571 = vmatpush1.msra.mxu0 0.0
    %572 = vmatprep.subr.mxu0 0.0
    %573 = vmatpush1.msra.mxu0 0.0
    %574 = vmatprep.subr.mxu0 0.0
    %575 = vmatpush1.msra.mxu0 0.0
    %576 = vmatprep.subr.mxu0 0.0
    %577 = vmatpush1.msra.mxu0 0.0
    %578 = vmatprep.subr.mxu0 0.0
    %579 = vmatpush1.msra.mxu0 0.0
    %580 = vmatprep.subr.mxu0 0.0
    %581 = vmatpush1.msra.mxu0 0.0
    %582 = vmatprep.mubr.f32.mxu0 0.0
    %583 = vmatmul.mubr.f32.gmra.mrb[0].mxu0 %v513
    %v584 = vpop.f32.mrb[0].mxu0
    %v585 = vadd.f32 0.0, %v584
    %v586 = vpop.f32.mrb[0].mxu0
    %587 = vmatprep.mubr.f32.mxu0 0.0
    %588 = vmatmul.mubr.f32.gmra.mrb[0].mxu0 %v516
    %v589 = vpop.f32.mrb[0].mxu0
    %v590 = vadd.f32 0.0, %v589
    %v591 = vpop.f32.mrb[0].mxu0
    %592 = vdwg.mxu0
    %v593 = vadd.f32 %v585, 1e-16
    %v594 = vadd.f32 %v590, 1e-16
    %596 = vset.pattern.permute.xlu0 64
    %597 = vperm.xlu0 %596, %v593
    %v598 = vpop.permute.xlu0 %597
    %601 = vset.pattern.permute.xlu0 64
    %602 = vperm.xlu0 %601, %v594
    %v603 = vpop.permute.xlu0 %602
    %v605 = vrcp.pop %v598
    %v606 = vmul.f32 %v585, %v605
    %v607 = vrcp.pop %v603
    %v608 = vmul.f32 %v590, %v607
    %611 = vrot.lane.b32.xlu0 %v155, 64
    %v612 = vpop.permute.xlu0 %611
    %613 = vrot.lane.b32.xlu0 %v160, 64
    %v614 = vpop.permute.xlu0 %613
    %v617 = vadd.f32 %v606, %v612
    %v618 = vadd.f32 %v608, %v614
    %619 = vset.pattern.permute.xlu0 65
    %620 = vperm.xlu0 %619, %v593
    %v621 = vpop.permute.xlu0 %620
    %623 = vset.pattern.permute.xlu0 65
    %624 = vperm.xlu0 %623, %v594
    %v625 = vpop.permute.xlu0 %624
    %v627 = vrcp.pop %v621
    %v628 = vmul.f32 %v585, %v627
    %v629 = vrcp.pop %v625
    %v630 = vmul.f32 %v590, %v629
    %v631 = vadd.f32 %v628, %v612
    %v632 = vadd.f32 %v630, %v614
    %v633 = vadd.f32 %v617, 0.0
    %v634 = vadd.f32 %v618, 0.0
    %637 = vrot.lane.b32.xlu0 %v631, 96
    %v638 = vpop.permute.xlu0 %637
    %639 = vrot.lane.b32.xlu0 %v632, 96
    %v640 = vpop.permute.xlu0 %639
    %v643 = vadd.f32 %v633, %v638
    %v644 = vadd.f32 %v634, %v640
    %v645 = vmul.f32 %v643, 0.5
    %v646 = vmul.f32 %v644, 0.5
    %v647 = vld [vmem:[%s8] sm:$0x1]
    %v649 = vlaneseq
    %v650 = vshrl.u32 %v649, 7
    %v651 = vsub.s32 0, %v650
    %v652 = vrot.slane %v647, %v651
    %v654 = vadd.f32 %v645, %v652
    %v655 = vadd.f32 %v646, %v652
    %656 = vst.msk [vmem:[#allocation2] sm:$0xff] %vm172, %v654
    %657 = vst.msk [vmem:[#allocation2 + $0x8] sm:$0xf] %vm176, %v655
    %s658 = sld [smem:[#allocation3]]
    %s659 = sld [smem:[#allocation6]]
    %s660 = scalar_lea.vmem [#allocation2], %s658
    %v661 = vld [vmem:[%s660] sm:$0x1]
    %s662 = scalar_lea.vmem %s12, %s659
    %v663 = vld [vmem:[%s662] sm:$0x1]
    %v664 = vadd.f32 %v661, %v663
    %v665 = vld [vmem:[%s13] sm:$0x1]
    %v666 = vadd.f32 %v664, %v665
    %s667 = sld [smem:[#allocation3 + $0x1]]
    %s668 = sld [smem:[#allocation6 + $0x1]]
    %s669 = scalar_lea.vmem [#allocation2], %s667
    %v670 = vld [vmem:[%s669] sm:$0x1]
    %s671 = scalar_lea.vmem %s12, %s668
    %v672 = vld [vmem:[%s671] sm:$0x1]
    %v673 = vadd.f32 %v670, %v672
    %v674 = vld [vmem:[%s13 + $0x1] sm:$0x1]
    %v675 = vadd.f32 %v673, %v674
    %s676 = sld [smem:[#allocation3 + $0x2]]
    %s677 = sld [smem:[#allocation6 + $0x2]]
    %s678 = scalar_lea.vmem [#allocation2], %s676
    %v679 = vld [vmem:[%s678] sm:$0x1]
    %s680 = scalar_lea.vmem %s12, %s677
    %v681 = vld [vmem:[%s680] sm:$0x1]
    %v682 = vadd.f32 %v679, %v681
    %v683 = vld [vmem:[%s13 + $0x2] sm:$0x1]
    %v684 = vadd.f32 %v682, %v683
    %s685 = sld [smem:[#allocation3 + $0x3]]
    %s686 = sld [smem:[#allocation6 + $0x3]]
    %s687 = scalar_lea.vmem [#allocation2], %s685
    %v688 = vld [vmem:[%s687] sm:$0x1]
    %s689 = scalar_lea.vmem %s12, %s686
    %v690 = vld [vmem:[%s689] sm:$0x1]
    %v691 = vadd.f32 %v688, %v690
    %v692 = vld [vmem:[%s13 + $0x3] sm:$0x1]
    %v693 = vadd.f32 %v691, %v692
    %s694 = sld [smem:[#allocation3 + $0x4]]
    %s695 = sld [smem:[#allocation6 + $0x4]]
    %s696 = scalar_lea.vmem [#allocation2], %s694
    %v697 = vld [vmem:[%s696] sm:$0x1]
    %s698 = scalar_lea.vmem %s12, %s695
    %v699 = vld [vmem:[%s698] sm:$0x1]
    %v700 = vadd.f32 %v697, %v699
    %v701 = vld [vmem:[%s13 + $0x4] sm:$0x1]
    %v702 = vadd.f32 %v700, %v701
    %s703 = sld [smem:[#allocation3 + $0x5]]
    %s704 = sld [smem:[#allocation6 + $0x5]]
    %s705 = scalar_lea.vmem [#allocation2], %s703
    %v706 = vld [vmem:[%s705] sm:$0x1]
    %s707 = scalar_lea.vmem %s12, %s704
    %v708 = vld [vmem:[%s707] sm:$0x1]
    %v709 = vadd.f32 %v706, %v708
    %v710 = vld [vmem:[%s13 + $0x5] sm:$0x1]
    %v711 = vadd.f32 %v709, %v710
    %s712 = sld [smem:[#allocation3 + $0x6]]
    %s713 = sld [smem:[#allocation6 + $0x6]]
    %s714 = scalar_lea.vmem [#allocation2], %s712
    %v715 = vld [vmem:[%s714] sm:$0x1]
    %s716 = scalar_lea.vmem %s12, %s713
    %v717 = vld [vmem:[%s716] sm:$0x1]
    %v718 = vadd.f32 %v715, %v717
    %v719 = vld [vmem:[%s13 + $0x6] sm:$0x1]
    %v720 = vadd.f32 %v718, %v719
    %s721 = sld [smem:[#allocation3 + $0x7]]
    %s722 = sld [smem:[#allocation6 + $0x7]]
    %s723 = scalar_lea.vmem [#allocation2], %s721
    %v724 = vld [vmem:[%s723] sm:$0x1]
    %s725 = scalar_lea.vmem %s12, %s722
    %v726 = vld [vmem:[%s725] sm:$0x1]
    %v727 = vadd.f32 %v724, %v726
    %v728 = vld [vmem:[%s13 + $0x7] sm:$0x1]
    %v729 = vadd.f32 %v727, %v728
    %v731 = vrot.slane %v675, 7
    %v734 = vrot.slane %v684, 6
    %v737 = vrot.slane %v693, 5
    %v740 = vrot.slane %v702, 4
    %v743 = vrot.slane %v711, 3
    %v746 = vrot.slane %v720, 2
    %v749 = vrot.slane %v729, 1
    %vm751 = vcmask 1040384
    %v752 = vsel %vm751, %v666, %v731
    %v753 = vsel %vm84, %v752, %v734
    %vm754 = vcmask 1042432
    %v755 = vsel %vm754, %v753, %v737
    %v756 = vsel %vm322, %v755, %v740
    %vm757 = vcmask 1044480
    %v758 = vsel %vm757, %v756, %v743
    %vm759 = vcmask 1045504
    %v760 = vsel %vm759, %v758, %v746
    %vm761 = vcmask 1046528
    %v762 = vsel %vm761, %v760, %v749
    %763 = vst.msk [vmem:[#allocation8] sm:$0xff] %vm172, %v762
    %s764 = sld [smem:[#allocation3 + $0x80]]
    %s765 = sld [smem:[#allocation6 + $0x80]]
    %s766 = scalar_lea.vmem [#allocation2], %s764
    %v767 = vld [vmem:[%s766] sm:$0x1]
    %s768 = scalar_lea.vmem %s12, %s765
    %v769 = vld [vmem:[%s768] sm:$0x1]
    %v770 = vadd.f32 %v767, %v769
    %v771 = vld [vmem:[%s13] sm:$0x1]
    %v772 = vadd.f32 %v770, %v771
    %s773 = sld [smem:[#allocation3 + $0x81]]
    %s774 = sld [smem:[#allocation6 + $0x81]]
    %s775 = scalar_lea.vmem [#allocation2], %s773
    %v776 = vld [vmem:[%s775] sm:$0x1]
    %s777 = scalar_lea.vmem %s12, %s774
    %v778 = vld [vmem:[%s777] sm:$0x1]
    %v779 = vadd.f32 %v776, %v778
    %v780 = vld [vmem:[%s13 + $0x1] sm:$0x1]
    %v781 = vadd.f32 %v779, %v780
    %s782 = sld [smem:[#allocation3 + $0x82]]
    %s783 = sld [smem:[#allocation6 + $0x82]]
    %s784 = scalar_lea.vmem [#allocation2], %s782
    %v785 = vld [vmem:[%s784] sm:$0x1]
    %s786 = scalar_lea.vmem %s12, %s783
    %v787 = vld [vmem:[%s786] sm:$0x1]
    %v788 = vadd.f32 %v785, %v787
    %v789 = vld [vmem:[%s13 + $0x2] sm:$0x1]
    %v790 = vadd.f32 %v788, %v789
    %s791 = sld [smem:[#allocation3 + $0x83]]
    %s792 = sld [smem:[#allocation6 + $0x83]]
    %s793 = scalar_lea.vmem [#allocation2], %s791
    %v794 = vld [vmem:[%s793] sm:$0x1]
    %s795 = scalar_lea.vmem %s12, %s792
    %v796 = vld [vmem:[%s795] sm:$0x1]
    %v797 = vadd.f32 %v794, %v796
    %v798 = vld [vmem:[%s13 + $0x3] sm:$0x1]
    %v799 = vadd.f32 %v797, %v798
    %s800 = sld [smem:[#allocation3 + $0x84]]
    %s801 = sld [smem:[#allocation6 + $0x84]]
    %s802 = scalar_lea.vmem [#allocation2], %s800
    %v803 = vld [vmem:[%s802] sm:$0x1]
    %s804 = scalar_lea.vmem %s12, %s801
    %v805 = vld [vmem:[%s804] sm:$0x1]
    %v806 = vadd.f32 %v803, %v805
    %v807 = vld [vmem:[%s13 + $0x4] sm:$0x1]
    %v808 = vadd.f32 %v806, %v807
    %s809 = sld [smem:[#allocation3 + $0x85]]
    %s810 = sld [smem:[#allocation6 + $0x85]]
    %s811 = scalar_lea.vmem [#allocation2], %s809
    %v812 = vld [vmem:[%s811] sm:$0x1]
    %s813 = scalar_lea.vmem %s12, %s810
    %v814 = vld [vmem:[%s813] sm:$0x1]
    %v815 = vadd.f32 %v812, %v814
    %v816 = vld [vmem:[%s13 + $0x5] sm:$0x1]
    %v817 = vadd.f32 %v815, %v816
    %s818 = sld [smem:[#allocation3 + $0x86]]
    %s819 = sld [smem:[#allocation6 + $0x86]]
    %s820 = scalar_lea.vmem [#allocation2], %s818
    %v821 = vld [vmem:[%s820] sm:$0x1]
    %s822 = scalar_lea.vmem %s12, %s819
    %v823 = vld [vmem:[%s822] sm:$0x1]
    %v824 = vadd.f32 %v821, %v823
    %v825 = vld [vmem:[%s13 + $0x6] sm:$0x1]
    %v826 = vadd.f32 %v824, %v825
    %s827 = sld [smem:[#allocation3 + $0x87]]
    %s828 = sld [smem:[#allocation6 + $0x87]]
    %s829 = scalar_lea.vmem [#allocation2], %s827
    %v830 = vld [vmem:[%s829] sm:$0x1]
    %s831 = scalar_lea.vmem %s12, %s828
    %v832 = vld [vmem:[%s831] sm:$0x1]
    %v833 = vadd.f32 %v830, %v832
    %v834 = vld [vmem:[%s13 + $0x7] sm:$0x1]
    %v835 = vadd.f32 %v833, %v834
    %v837 = vrot.slane %v781, 7
    %v840 = vrot.slane %v790, 6
    %v843 = vrot.slane %v799, 5
    %v846 = vrot.slane %v808, 4
    %v849 = vrot.slane %v817, 3
    %v852 = vrot.slane %v826, 2
    %v855 = vrot.slane %v835, 1
    %v857 = vsel %vm751, %v772, %v837
    %v858 = vsel %vm84, %v857, %v840
    %v859 = vsel %vm754, %v858, %v843
    %v860 = vsel %vm322, %v859, %v846
    %v861 = vsel %vm757, %v860, %v849
    %v862 = vsel %vm759, %v861, %v852
    %v863 = vsel %vm761, %v862, %v855
    %s864 = scalar_lea.vmem [#allocation8], 8
    %865 = vst.msk [vmem:[%s864] sm:$0xff] %vm172, %v863
    // Predicated region
    $region66: #{node_embedding_forward.1} parent=1 // pred_check
      _
    $region67: #{node_embedding_forward.1} parent=1 // pred_check_branch
      %867 = sbr.rel (0) target = $region69
    $region68: #{node_embedding_forward.1} parent=1 // pred_region
      %s869 = ssub.s32 256, 256
      %870 = vsyncadd [#allocation4], %s869
      %s871 = sshll.u32 [#allocation8], 4
      %s872 = int_to_ptr.vmem [resolvable:$true] %s871
      %877 = dma.vmem_to_hbm [thread:$0]  %s872, 256, %s14, [#allocation4], 128, 128, 8
    $region69: #{node_embedding_forward.1} parent=1 // pred_fallthru
      _
    // Predicated region
    $region70: #{node_embedding_forward.1} parent=1 // pred_check
      _
    $region71: #{node_embedding_forward.1} parent=1 // pred_check_branch
      %879 = sbr.rel (0) target = $region73
    $region72: #{node_embedding_forward.1} parent=1 // pred_region
      %880 = dma.done [#allocation4], 256
    $region73: #{node_embedding_forward.1} parent=1 // pred_fallthru
      _
    %881 = vsyncpa [#allocation4], 1
    %882 = vsyncpa [#allocation5], 1
    %883 = vsyncpa [#allocation7], 1

</llo_original>
